<compile_context>
chip_gen: v6e
topology: v6e:2x2x1
jax: 0.10.0
libtpu: 0.0.40
codegen_flags: <defaults>
</compile_context>

<pallas_src>
import jax
import jax.numpy as jnp
from jax.experimental import pallas as pl
from jax.experimental.pallas import tpu as pltpu

EPS = 1e-5  # nn.BatchNorm2d default eps


# ---------------- fused Pallas kernel ----------------

def _make_fused_kernel(N, C_out, k, Wp, SPAN, HW, eps):
    inv_m = 1.0 / float(N * HW)          # BN normalizes with biased (1/M) statistics

    def kernel(x_ref, w_ref, sel_ref, b_ref, g_ref, bt_ref, o_ref,
               y_slab, ssum, ssq, scale_ref, shift_ref):
        ph = pl.program_id(0)            # 0: conv + stats, 1: BN + ReLU
        n = pl.program_id(1)             # image index

        # ---------- phase 0: transposed conv (in-kernel im2col) + BN stats ----------
        @pl.when(ph == 0)
        def _conv_and_stats():
            @pl.when(n == 0)
            def _init():
                ssum[...] = jnp.zeros_like(ssum)
                ssq[...] = jnp.zeros_like(ssq)

            # k*k shifted bf16 matmuls over the flattened padded image
            # (wide columns use the input row stride Wp).
            acc = jnp.zeros((C_out, SPAN), jnp.float32)
            for kh in range(k):
                for kw in range(k):
                    s0 = kh * Wp + kw
                    xs = x_ref[0, :, s0:s0 + SPAN]            # (C_in, SPAN) bf16
                    wt = w_ref[kh * k + kw]                   # (C_out, C_in) bf16
                    acc = acc + jnp.dot(wt, xs, preferred_element_type=jnp.float32)

            # compact wide rows (stride Wp) -> dense output rows (stride W_out)
            # with a constant 0/1 selection matmul; result is fully lane-dense.
            y = jnp.dot(acc, sel_ref[...], preferred_element_type=jnp.float32)
            y = y + b_ref[...]                                # (C_out, HW)

            y_slab[n] = y                                     # stays in VMEM
            ssum[...] += jnp.sum(y, axis=1, keepdims=True)
            ssq[...] += jnp.sum(y * y, axis=1, keepdims=True)

        # ---------- phase 1: batch-norm (batch stats) + affine + ReLU ----------
        @pl.when(ph == 1)
        def _bn_relu():
            @pl.when(n == 0)
            def _finalize_stats():                            # hoisted scale/shift
                mean = ssum[...] * inv_m
                var = jnp.maximum(ssq[...] * inv_m - mean * mean, 0.0)
                sc = g_ref[...] * jax.lax.rsqrt(var + eps)
                scale_ref[...] = sc
                shift_ref[...] = bt_ref[...] - mean * sc

            yv = y_slab[n]                                    # (C_out, HW) f32
            o_ref[0] = jnp.maximum(yv * scale_ref[...] + shift_ref[...], 0.0)

    return kernel


# ---------------- wrapper ----------------

def conv_trans_block(x, weight, bias, gamma, beta, *, stride, padding, output_padding):
    """x: [N, C_in, H, W] NCHW, weight: [C_in, C_out, k, k] (PyTorch ConvTranspose2d)."""
    N, C_in, H, W = x.shape
    _, C_out, k, _ = weight.shape
    s, p, op = stride, padding, output_padding
    assert p <= k - 1, "padding > kernel_size-1 not supported"
    assert op < s, "output_padding must be < stride"

    H_out = (H - 1) * s - 2 * p + k + op
    W_out = (W - 1) * s - 2 * p + k + op
    HW = H_out * W_out

    # equivalent forward conv: dilate input by stride, pad by (k-1-p) (+op bottom/right)
    Hd, Wd = (H - 1) * s + 1, (W - 1) * s + 1
    pad = k - 1 - p
    Hp, Wp = Hd + 2 * pad + op, Wd + 2 * pad + op     # = H_out + k - 1, W_out + k - 1
    SPAN = H_out * Wp                                 # wide row span per image
    Lflat = Hp * Wp + (k - 1)                         # tail pad so every tap slice fits

    xd = jnp.zeros((N, C_in, Hd, Wd), x.dtype).at[:, :, ::s, ::s].set(x)
    xpd = jnp.pad(xd, ((0, 0), (0, 0), (pad, pad + op), (pad, pad + op)))
    xflat = jnp.pad(xpd.reshape(N, C_in, Hp * Wp), ((0, 0), (0, 0), (0, k - 1)))
    xflat = xflat.astype(jnp.bfloat16)                # bf16 MXU operand, f32 accumulate

    # per-tap channel-mixing weights: w_taps[kh*k + kw, co, ci] (kernel spatially flipped)
    w_taps = jnp.flip(weight, axis=(2, 3)).transpose(2, 3, 1, 0)
    w_taps = w_taps.reshape(k * k, C_out, C_in).astype(jnp.bfloat16)

    # constant 0/1 selection matrix: wide column (oh*Wp + ow) -> dense column (oh*W_out + ow)
    q = jnp.arange(HW)
    src = (q // W_out) * Wp + (q % W_out)
    sel = (jnp.arange(SPAN)[:, None] == src[None, :]).astype(jnp.float32)   # (SPAN, HW)

    bias2 = bias.reshape(C_out, 1).astype(jnp.float32)
    gamma2 = gamma.reshape(C_out, 1).astype(jnp.float32)
    beta2 = beta.reshape(C_out, 1).astype(jnp.float32)

    kernel = _make_fused_kernel(N, C_out, k, Wp, SPAN, HW, EPS)

    flops = (2 * N * C_out * SPAN * C_in * k * k      # tap matmuls
             + 2 * N * C_out * HW * SPAN              # selection matmul
             + 6 * N * C_out * HW)                    # stats + BN + ReLU
    bytes_accessed = (N * C_in * Lflat * 2 + k * k * C_out * C_in * 2
                      + SPAN * HW * 4 + 3 * C_out * 4 + N * C_out * HW * 4)

    out_flat = pl.pallas_call(
        kernel,
        out_shape=jax.ShapeDtypeStruct((N, C_out, HW), jnp.float32),
        grid=(2, N),                                  # (phase, image)
        in_specs=[
            pl.BlockSpec((1, C_in, Lflat), lambda ph, n: ((1 - ph) * n, 0, 0)),
            pl.BlockSpec((k * k, C_out, C_in), lambda ph, n: (0, 0, 0)),
            pl.BlockSpec((SPAN, HW), lambda ph, n: (0, 0)),
            pl.BlockSpec((C_out, 1), lambda ph, n: (0, 0)),
            pl.BlockSpec((C_out, 1), lambda ph, n: (0, 0)),
            pl.BlockSpec((C_out, 1), lambda ph, n: (0, 0)),
        ],
        # phase 0 parks the output window on block 0 (never written there);
        # phase 1 writes every block exactly once -> only correct data reaches HBM.
        out_specs=pl.BlockSpec((1, C_out, HW), lambda ph, n: (ph * n, 0, 0)),
        scratch_shapes=[
            pltpu.VMEM((N, C_out, HW), jnp.float32),   # y slab (resident across phases)
            pltpu.VMEM((C_out, 1), jnp.float32),       # sum(y)
            pltpu.VMEM((C_out, 1), jnp.float32),       # sum(y*y)
            pltpu.VMEM((C_out, 1), jnp.float32),       # hoisted BN scale
            pltpu.VMEM((C_out, 1), jnp.float32),       # hoisted BN shift
        ],
        compiler_params=pltpu.CompilerParams(
            dimension_semantics=("arbitrary", "arbitrary"),   # stats accumulate sequentially
            vmem_limit_bytes=32 * 1024 * 1024),
        cost_estimate=pl.CostEstimate(flops=int(flops), transcendentals=int(C_out),
                                      bytes_accessed=int(bytes_accessed)),
    )(xflat, w_taps, sel, bias2, gamma2, beta2)

    # pure reshape to NCHW — no transpose pass
    return out_flat.reshape(N, C_out, H_out, W_out)


# ---------------- pure-JAX reference (f32) ----------------

def reference(x, weight, bias, gamma, beta, stride, padding, output_padding):
    k = weight.shape[2]
    s, p, op = stride, padding, output_padding
    w_c = jnp.flip(weight, axis=(2, 3)).transpose(1, 0, 2, 3)  # [C_out, C_in, kh, kw]
    pad = k - 1 - p
    y = jax.lax.conv_general_dilated(
        x, w_c, window_strides=(1, 1),
        padding=[(pad, pad + op), (pad, pad + op)],
        lhs_dilation=(s, s),
        dimension_numbers=('NCHW', 'OIHW', 'NCHW'))
    y = y + bias.reshape(1, -1, 1, 1)
    mean = y.mean(axis=(0, 2, 3), keepdims=True)
    var = y.var(axis=(0, 2, 3), keepdims=True)                 # biased, like BN normalization
    xhat = (y - mean) / jnp.sqrt(var + EPS)
    out = xhat * gamma.reshape(1, -1, 1, 1) + beta.reshape(1, -1, 1, 1)
    return jnp.maximum(out, 0.0)


if __name__ == "__main__":
    key = jax.random.PRNGKey(0)
    kx, kw, kb, kg, kbe = jax.random.split(key, 5)

    # ConvTransBlock(in_channels=4, out_channels=8, kernel_size=3,
    #                stride=2, padding=1, output_padding=1):  (2,4,8,8) -> (2,8,16,16)
    N, C_in, C_out, H, W = 2, 4, 8, 8, 8
    k, s, p, op = 3, 2, 1, 1

    x = jax.random.normal(kx, (N, C_in, H, W), jnp.float32)
    weight = 0.1 * jax.random.normal(kw, (C_in, C_out, k, k), jnp.float32)
    bias = 0.1 * jax.random.normal(kb, (C_out,), jnp.float32)
    gamma = 1.0 + 0.1 * jax.random.normal(kg, (C_out,), jnp.float32)
    beta = 0.1 * jax.random.normal(kbe, (C_out,), jnp.float32)

    out = conv_trans_block(x, weight, bias, gamma, beta,
                           stride=s, padding=p, output_padding=op)
    out = jax.block_until_ready(out)

    ref = reference(x, weight, bias, gamma, beta, s, p, op)
    assert out.shape == ref.shape == (N, C_out, 16, 16), out.shape
    err = float(jnp.max(jnp.abs(out - ref)))
    # bf16 MXU operands (f32 accumulation) vs. the f32 reference -> loosened tolerance
    assert err < 2e-2, err
    print("KERNEL_OK")
</pallas_src>

<mosaic_0001>
module attributes {stable_mosaic.version = 11 : i64} {
  func.func @kernel(%arg0: i32, %arg1: i32, %arg2: memref<1x4x326xbf16, #tpu.memory_space<vmem>>, %arg3: memref<9x8x4xbf16, #tpu.memory_space<vmem>>, %arg4: memref<288x256xf32, #tpu.memory_space<vmem>>, %arg5: memref<8x1xf32, #tpu.memory_space<vmem>>, %arg6: memref<8x1xf32, #tpu.memory_space<vmem>>, %arg7: memref<8x1xf32, #tpu.memory_space<vmem>>, %arg8: memref<1x8x256xf32, #tpu.memory_space<vmem>>, %arg9: memref<2x8x256xf32, #tpu.memory_space<vmem>>, %arg10: memref<8x1xf32, #tpu.memory_space<vmem>>, %arg11: memref<8x1xf32, #tpu.memory_space<vmem>>, %arg12: memref<8x1xf32, #tpu.memory_space<vmem>>, %arg13: memref<8x1xf32, #tpu.memory_space<vmem>>) attributes {dimension_semantics = [#tpu.dimension_semantics<arbitrary>, #tpu.dimension_semantics<arbitrary>], iteration_bounds = array<i64: 2, 2>, scalar_prefetch = 0 : i64, scratch_operands = 5 : i64, tpu.core_type = #tpu.core_type<tc>, window_params = [{transform_indices = @transform_0, window_bounds = array<i64: 1, 4, 326>}, {pipeline_mode = #tpu.pipeline_mode<synchronous>, transform_indices = @transform_1, window_bounds = array<i64: 9, 8, 4>}, {pipeline_mode = #tpu.pipeline_mode<synchronous>, transform_indices = @transform_2, window_bounds = array<i64: 288, 256>}, {pipeline_mode = #tpu.pipeline_mode<synchronous>, transform_indices = @transform_3, window_bounds = array<i64: 8, 1>}, {pipeline_mode = #tpu.pipeline_mode<synchronous>, transform_indices = @transform_4, window_bounds = array<i64: 8, 1>}, {pipeline_mode = #tpu.pipeline_mode<synchronous>, transform_indices = @transform_5, window_bounds = array<i64: 8, 1>}, {transform_indices = @transform_6, window_bounds = array<i64: 1, 8, 256>}]} {
    %c0_i32 = arith.constant 0 : i32
    %0 = arith.cmpi eq, %arg0, %c0_i32 : i32
    %1 = arith.extui %0 : i1 to i32
    %c0_i32_0 = arith.constant 0 : i32
    %2 = arith.cmpi ne, %1, %c0_i32_0 : i32
    scf.if %2 {
      %c0_i32_2 = arith.constant 0 : i32
      %6 = arith.cmpi eq, %arg1, %c0_i32_2 : i32
      %7 = arith.extui %6 : i1 to i32
      %c0_i32_3 = arith.constant 0 : i32
      %8 = arith.cmpi ne, %7, %c0_i32_3 : i32
      scf.if %8 {
        %cst_69 = arith.constant 0.000000e+00 : f32
        %84 = vector.broadcast %cst_69 : f32 to vector<8x1xf32>
        %c0_70 = arith.constant 0 : index
        %c0_71 = arith.constant 0 : index
        %85 = vector.load %arg10[%c0_70, %c0_71] : memref<8x1xf32, #tpu.memory_space<vmem>>, vector<8x1xf32>
        tpu.vector_store %arg10[%c0_70, %c0_71], %84 {strides = array<i32>} : memref<8x1xf32, #tpu.memory_space<vmem>>, vector<8x1xf32>,
        %cst_72 = arith.constant 0.000000e+00 : f32
        %86 = vector.broadcast %cst_72 : f32 to vector<8x1xf32>
        %c0_73 = arith.constant 0 : index
        %c0_74 = arith.constant 0 : index
        %87 = vector.load %arg11[%c0_73, %c0_74] : memref<8x1xf32, #tpu.memory_space<vmem>>, vector<8x1xf32>
        tpu.vector_store %arg11[%c0_73, %c0_74], %86 {strides = array<i32>} : memref<8x1xf32, #tpu.memory_space<vmem>>, vector<8x1xf32>,
      } else {
      }
      %cst = arith.constant 0.000000e+00 : f32
      %9 = vector.broadcast %cst : f32 to vector<8x288xf32>
      %c0 = arith.constant 0 : index
      %c0_4 = arith.constant 0 : index
      %c0_5 = arith.constant 0 : index
      %10 = vector.load %arg2[%c0, %c0_4, %c0_5] : memref<1x4x326xbf16, #tpu.memory_space<vmem>>, vector<1x4x288xbf16>
      %11 = vector.shape_cast %10 : vector<1x4x288xbf16> to vector<4x288xbf16>
      %c0_6 = arith.constant 0 : index
      %c0_7 = arith.constant 0 : index
      %c0_8 = arith.constant 0 : index
      %12 = vector.load %arg3[%c0_6, %c0_7, %c0_8] : memref<9x8x4xbf16, #tpu.memory_space<vmem>>, vector<1x8x4xbf16>
      %13 = vector.shape_cast %12 : vector<1x8x4xbf16> to vector<8x4xbf16>
      %cst_9 = arith.constant dense<0.000000e+00> : vector<8x288xf32>
      %14 = tpu.matmul %13, %11, %cst_9 {dimension_numbers = #tpu.dot_dimension_numbers<[1], [0], [0], [1], [0, 0, 1, 1], [], []>} : vector<8x4xbf16>, vector<4x288xbf16>, vector<8x288xf32> -> vector<8x288xf32>
      %15 = arith.addf %9, %14 : vector<8x288xf32>
      %c0_10 = arith.constant 0 : index
      %c0_11 = arith.constant 0 : index
      %c1 = arith.constant 1 : index
      %16 = vector.load %arg2[%c0_10, %c0_11, %c1] : memref<1x4x326xbf16, #tpu.memory_space<vmem>>, vector<1x4x288xbf16>
      %17 = vector.shape_cast %16 : vector<1x4x288xbf16> to vector<4x288xbf16>
      %c1_12 = arith.constant 1 : index
      %c0_13 = arith.constant 0 : index
      %c0_14 = arith.constant 0 : index
      %18 = vector.load %arg3[%c1_12, %c0_13, %c0_14] : memref<9x8x4xbf16, #tpu.memory_space<vmem>>, vector<1x8x4xbf16>
      %19 = vector.shape_cast %18 : vector<1x8x4xbf16> to vector<8x4xbf16>
      %cst_15 = arith.constant dense<0.000000e+00> : vector<8x288xf32>
      %20 = tpu.matmul %19, %17, %cst_15 {dimension_numbers = #tpu.dot_dimension_numbers<[1], [0], [0], [1], [0, 0, 1, 1], [], []>} : vector<8x4xbf16>, vector<4x288xbf16>, vector<8x288xf32> -> vector<8x288xf32>
      %21 = arith.addf %15, %20 : vector<8x288xf32>
      %c0_16 = arith.constant 0 : index
      %c0_17 = arith.constant 0 : index
      %c2 = arith.constant 2 : index
      %22 = vector.load %arg2[%c0_16, %c0_17, %c2] : memref<1x4x326xbf16, #tpu.memory_space<vmem>>, vector<1x4x288xbf16>
      %23 = vector.shape_cast %22 : vector<1x4x288xbf16> to vector<4x288xbf16>
      %c2_18 = arith.constant 2 : index
      %c0_19 = arith.constant 0 : index
      %c0_20 = arith.constant 0 : index
      %24 = vector.load %arg3[%c2_18, %c0_19, %c0_20] : memref<9x8x4xbf16, #tpu.memory_space<vmem>>, vector<1x8x4xbf16>
      %25 = vector.shape_cast %24 : vector<1x8x4xbf16> to vector<8x4xbf16>
      %cst_21 = arith.constant dense<0.000000e+00> : vector<8x288xf32>
      %26 = tpu.matmul %25, %23, %cst_21 {dimension_numbers = #tpu.dot_dimension_numbers<[1], [0], [0], [1], [0, 0, 1, 1], [], []>} : vector<8x4xbf16>, vector<4x288xbf16>, vector<8x288xf32> -> vector<8x288xf32>
      %27 = arith.addf %21, %26 : vector<8x288xf32>
      %c0_22 = arith.constant 0 : index
      %c0_23 = arith.constant 0 : index
      %c18 = arith.constant 18 : index
      %28 = vector.load %arg2[%c0_22, %c0_23, %c18] : memref<1x4x326xbf16, #tpu.memory_space<vmem>>, vector<1x4x288xbf16>
      %29 = vector.shape_cast %28 : vector<1x4x288xbf16> to vector<4x288xbf16>
      %c3 = arith.constant 3 : index
      %c0_24 = arith.constant 0 : index
      %c0_25 = arith.constant 0 : index
      %30 = vector.load %arg3[%c3, %c0_24, %c0_25] : memref<9x8x4xbf16, #tpu.memory_space<vmem>>, vector<1x8x4xbf16>
      %31 = vector.shape_cast %30 : vector<1x8x4xbf16> to vector<8x4xbf16>
      %cst_26 = arith.constant dense<0.000000e+00> : vector<8x288xf32>
      %32 = tpu.matmul %31, %29, %cst_26 {dimension_numbers = #tpu.dot_dimension_numbers<[1], [0], [0], [1], [0, 0, 1, 1], [], []>} : vector<8x4xbf16>, vector<4x288xbf16>, vector<8x288xf32> -> vector<8x288xf32>
      %33 = arith.addf %27, %32 : vector<8x288xf32>
      %c0_27 = arith.constant 0 : index
      %c0_28 = arith.constant 0 : index
      %c19 = arith.constant 19 : index
      %34 = vector.load %arg2[%c0_27, %c0_28, %c19] : memref<1x4x326xbf16, #tpu.memory_space<vmem>>, vector<1x4x288xbf16>
      %35 = vector.shape_cast %34 : vector<1x4x288xbf16> to vector<4x288xbf16>
      %c4 = arith.constant 4 : index
      %c0_29 = arith.constant 0 : index
      %c0_30 = arith.constant 0 : index
      %36 = vector.load %arg3[%c4, %c0_29, %c0_30] : memref<9x8x4xbf16, #tpu.memory_space<vmem>>, vector<1x8x4xbf16>
      %37 = vector.shape_cast %36 : vector<1x8x4xbf16> to vector<8x4xbf16>
      %cst_31 = arith.constant dense<0.000000e+00> : vector<8x288xf32>
      %38 = tpu.matmul %37, %35, %cst_31 {dimension_numbers = #tpu.dot_dimension_numbers<[1], [0], [0], [1], [0, 0, 1, 1], [], []>} : vector<8x4xbf16>, vector<4x288xbf16>, vector<8x288xf32> -> vector<8x288xf32>
      %39 = arith.addf %33, %38 : vector<8x288xf32>
      %c0_32 = arith.constant 0 : index
      %c0_33 = arith.constant 0 : index
      %c20 = arith.constant 20 : index
      %40 = vector.load %arg2[%c0_32, %c0_33, %c20] : memref<1x4x326xbf16, #tpu.memory_space<vmem>>, vector<1x4x288xbf16>
      %41 = vector.shape_cast %40 : vector<1x4x288xbf16> to vector<4x288xbf16>
      %c5 = arith.constant 5 : index
      %c0_34 = arith.constant 0 : index
      %c0_35 = arith.constant 0 : index
      %42 = vector.load %arg3[%c5, %c0_34, %c0_35] : memref<9x8x4xbf16, #tpu.memory_space<vmem>>, vector<1x8x4xbf16>
      %43 = vector.shape_cast %42 : vector<1x8x4xbf16> to vector<8x4xbf16>
      %cst_36 = arith.constant dense<0.000000e+00> : vector<8x288xf32>
      %44 = tpu.matmul %43, %41, %cst_36 {dimension_numbers = #tpu.dot_dimension_numbers<[1], [0], [0], [1], [0, 0, 1, 1], [], []>} : vector<8x4xbf16>, vector<4x288xbf16>, vector<8x288xf32> -> vector<8x288xf32>
      %45 = arith.addf %39, %44 : vector<8x288xf32>
      %c0_37 = arith.constant 0 : index
      %c0_38 = arith.constant 0 : index
      %c36 = arith.constant 36 : index
      %46 = vector.load %arg2[%c0_37, %c0_38, %c36] : memref<1x4x326xbf16, #tpu.memory_space<vmem>>, vector<1x4x288xbf16>
      %47 = vector.shape_cast %46 : vector<1x4x288xbf16> to vector<4x288xbf16>
      %c6 = arith.constant 6 : index
      %c0_39 = arith.constant 0 : index
      %c0_40 = arith.constant 0 : index
      %48 = vector.load %arg3[%c6, %c0_39, %c0_40] : memref<9x8x4xbf16, #tpu.memory_space<vmem>>, vector<1x8x4xbf16>
      %49 = vector.shape_cast %48 : vector<1x8x4xbf16> to vector<8x4xbf16>
      %cst_41 = arith.constant dense<0.000000e+00> : vector<8x288xf32>
      %50 = tpu.matmul %49, %47, %cst_41 {dimension_numbers = #tpu.dot_dimension_numbers<[1], [0], [0], [1], [0, 0, 1, 1], [], []>} : vector<8x4xbf16>, vector<4x288xbf16>, vector<8x288xf32> -> vector<8x288xf32>
      %51 = arith.addf %45, %50 : vector<8x288xf32>
      %c0_42 = arith.constant 0 : index
      %c0_43 = arith.constant 0 : index
      %c37 = arith.constant 37 : index
      %52 = vector.load %arg2[%c0_42, %c0_43, %c37] : memref<1x4x326xbf16, #tpu.memory_space<vmem>>, vector<1x4x288xbf16>
      %53 = vector.shape_cast %52 : vector<1x4x288xbf16> to vector<4x288xbf16>
      %c7 = arith.constant 7 : index
      %c0_44 = arith.constant 0 : index
      %c0_45 = arith.constant 0 : index
      %54 = vector.load %arg3[%c7, %c0_44, %c0_45] : memref<9x8x4xbf16, #tpu.memory_space<vmem>>, vector<1x8x4xbf16>
      %55 = vector.shape_cast %54 : vector<1x8x4xbf16> to vector<8x4xbf16>
      %cst_46 = arith.constant dense<0.000000e+00> : vector<8x288xf32>
      %56 = tpu.matmul %55, %53, %cst_46 {dimension_numbers = #tpu.dot_dimension_numbers<[1], [0], [0], [1], [0, 0, 1, 1], [], []>} : vector<8x4xbf16>, vector<4x288xbf16>, vector<8x288xf32> -> vector<8x288xf32>
      %57 = arith.addf %51, %56 : vector<8x288xf32>
      %c0_47 = arith.constant 0 : index
      %c0_48 = arith.constant 0 : index
      %c38 = arith.constant 38 : index
      %58 = vector.load %arg2[%c0_47, %c0_48, %c38] : memref<1x4x326xbf16, #tpu.memory_space<vmem>>, vector<1x4x288xbf16>
      %59 = vector.shape_cast %58 : vector<1x4x288xbf16> to vector<4x288xbf16>
      %c8 = arith.constant 8 : index
      %c0_49 = arith.constant 0 : index
      %c0_50 = arith.constant 0 : index
      %60 = vector.load %arg3[%c8, %c0_49, %c0_50] : memref<9x8x4xbf16, #tpu.memory_space<vmem>>, vector<1x8x4xbf16>
      %61 = vector.shape_cast %60 : vector<1x8x4xbf16> to vector<8x4xbf16>
      %cst_51 = arith.constant dense<0.000000e+00> : vector<8x288xf32>
      %62 = tpu.matmul %61, %59, %cst_51 {dimension_numbers = #tpu.dot_dimension_numbers<[1], [0], [0], [1], [0, 0, 1, 1], [], []>} : vector<8x4xbf16>, vector<4x288xbf16>, vector<8x288xf32> -> vector<8x288xf32>
      %63 = arith.addf %57, %62 : vector<8x288xf32>
      %c0_52 = arith.constant 0 : index
      %c0_53 = arith.constant 0 : index
      %64 = vector.load %arg4[%c0_52, %c0_53] : memref<288x256xf32, #tpu.memory_space<vmem>>, vector<288x256xf32>
      %cst_54 = arith.constant dense<0.000000e+00> : vector<8x256xf32>
      %65 = tpu.matmul %63, %64, %cst_54 {dimension_numbers = #tpu.dot_dimension_numbers<[1], [0], [0], [1], [0, 0, 1, 1], [], []>} : vector<8x288xf32>, vector<288x256xf32>, vector<8x256xf32> -> vector<8x256xf32>
      %c0_55 = arith.constant 0 : index
      %c0_56 = arith.constant 0 : index
      %66 = vector.load %arg5[%c0_55, %c0_56] : memref<8x1xf32, #tpu.memory_space<vmem>>, vector<8x1xf32>
      %67 = vector.broadcast %66 : vector<8x1xf32> to vector<8x256xf32>
      %68 = arith.addf %65, %67 : vector<8x256xf32>
      %69 = arith.index_cast %arg1 : i32 to index
      %c0_57 = arith.constant 0 : index
      %c0_58 = arith.constant 0 : index
      %70 = vector.load %arg9[%69, %c0_57, %c0_58] : memref<2x8x256xf32, #tpu.memory_space<vmem>>, vector<1x8x256xf32>
      %71 = vector.shape_cast %70 : vector<1x8x256xf32> to vector<8x256xf32>
      %72 = vector.shape_cast %68 : vector<8x256xf32> to vector<1x8x256xf32>
      tpu.vector_store %arg9[%69, %c0_57, %c0_58], %72 {strides = array<i32>} : memref<2x8x256xf32, #tpu.memory_space<vmem>>, vector<1x8x256xf32>,
      %c0_59 = arith.constant 0 : index
      %c0_60 = arith.constant 0 : index
      %73 = vector.load %arg10[%c0_59, %c0_60] : memref<8x1xf32, #tpu.memory_space<vmem>>, vector<8x1xf32>
      %cst_61 = arith.constant dense<0.000000e+00> : vector<8xf32>
      %74 = vector.multi_reduction <add>, %68, %cst_61 [1] : vector<8x256xf32> to vector<8xf32>
      %75 = vector.shape_cast %74 : vector<8xf32> to vector<8x1xf32>
      %76 = arith.addf %73, %75 : vector<8x1xf32>
      %c0_62 = arith.constant 0 : index
      %c0_63 = arith.constant 0 : index
      %77 = vector.load %arg10[%c0_62, %c0_63] : memref<8x1xf32, #tpu.memory_space<vmem>>, vector<8x1xf32>
      tpu.vector_store %arg10[%c0_62, %c0_63], %76 {strides = array<i32>} : memref<8x1xf32, #tpu.memory_space<vmem>>, vector<8x1xf32>,
      %c0_64 = arith.constant 0 : index
      %c0_65 = arith.constant 0 : index
      %78 = vector.load %arg11[%c0_64, %c0_65] : memref<8x1xf32, #tpu.memory_space<vmem>>, vector<8x1xf32>
      %79 = arith.mulf %68, %68 : vector<8x256xf32>
      %cst_66 = arith.constant dense<0.000000e+00> : vector<8xf32>
      %80 = vector.multi_reduction <add>, %79, %cst_66 [1] : vector<8x256xf32> to vector<8xf32>
      %81 = vector.shape_cast %80 : vector<8xf32> to vector<8x1xf32>
      %82 = arith.addf %78, %81 : vector<8x1xf32>
      %c0_67 = arith.constant 0 : index
      %c0_68 = arith.constant 0 : index
      %83 = vector.load %arg11[%c0_67, %c0_68] : memref<8x1xf32, #tpu.memory_space<vmem>>, vector<8x1xf32>
      tpu.vector_store %arg11[%c0_67, %c0_68], %82 {strides = array<i32>} : memref<8x1xf32, #tpu.memory_space<vmem>>, vector<8x1xf32>,
    } else {
    }
    %c1_i32 = arith.constant 1 : i32
    %3 = arith.cmpi eq, %arg0, %c1_i32 : i32
    %4 = arith.extui %3 : i1 to i32
    %c0_i32_1 = arith.constant 0 : i32
    %5 = arith.cmpi ne, %4, %c0_i32_1 : i32
    scf.if %5 {
      %c0_i32_2 = arith.constant 0 : i32
      %6 = arith.cmpi eq, %arg1, %c0_i32_2 : i32
      %7 = arith.extui %6 : i1 to i32
      %c0_i32_3 = arith.constant 0 : i32
      %8 = arith.cmpi ne, %7, %c0_i32_3 : i32
      scf.if %8 {
        %c0_12 = arith.constant 0 : index
        %c0_13 = arith.constant 0 : index
        %23 = vector.load %arg10[%c0_12, %c0_13] : memref<8x1xf32, #tpu.memory_space<vmem>>, vector<8x1xf32>
        %cst_14 = arith.constant 0.001953125 : f32
        %24 = vector.broadcast %cst_14 : f32 to vector<8x1xf32>
        %25 = arith.mulf %23, %24 : vector<8x1xf32>
        %c0_15 = arith.constant 0 : index
        %c0_16 = arith.constant 0 : index
        %26 = vector.load %arg11[%c0_15, %c0_16] : memref<8x1xf32, #tpu.memory_space<vmem>>, vector<8x1xf32>
        %cst_17 = arith.constant 0.001953125 : f32
        %27 = vector.broadcast %cst_17 : f32 to vector<8x1xf32>
        %28 = arith.mulf %26, %27 : vector<8x1xf32>
        %29 = arith.mulf %25, %25 : vector<8x1xf32>
        %30 = arith.subf %28, %29 : vector<8x1xf32>
        %cst_18 = arith.constant 0.000000e+00 : f32
        %31 = vector.broadcast %cst_18 : f32 to vector<8x1xf32>
        %32 = arith.maximumf %30, %31 : vector<8x1xf32>
        %c0_19 = arith.constant 0 : index
        %c0_20 = arith.constant 0 : index
        %33 = vector.load %arg6[%c0_19, %c0_20] : memref<8x1xf32, #tpu.memory_space<vmem>>, vector<8x1xf32>
        %cst_21 = arith.constant 9.99999974E-6 : f32
        %34 = vector.broadcast %cst_21 : f32 to vector<8x1xf32>
        %35 = arith.addf %32, %34 : vector<8x1xf32>
        %36 = math.rsqrt %35 : vector<8x1xf32>
        %37 = arith.mulf %33, %36 : vector<8x1xf32>
        %c0_22 = arith.constant 0 : index
        %c0_23 = arith.constant 0 : index
        %38 = vector.load %arg12[%c0_22, %c0_23] : memref<8x1xf32, #tpu.memory_space<vmem>>, vector<8x1xf32>
        tpu.vector_store %arg12[%c0_22, %c0_23], %37 {strides = array<i32>} : memref<8x1xf32, #tpu.memory_space<vmem>>, vector<8x1xf32>,
        %c0_24 = arith.constant 0 : index
        %c0_25 = arith.constant 0 : index
        %39 = vector.load %arg7[%c0_24, %c0_25] : memref<8x1xf32, #tpu.memory_space<vmem>>, vector<8x1xf32>
        %40 = arith.mulf %25, %37 : vector<8x1xf32>
        %41 = arith.subf %39, %40 : vector<8x1xf32>
        %c0_26 = arith.constant 0 : index
        %c0_27 = arith.constant 0 : index
        %42 = vector.load %arg13[%c0_26, %c0_27] : memref<8x1xf32, #tpu.memory_space<vmem>>, vector<8x1xf32>
        tpu.vector_store %arg13[%c0_26, %c0_27], %41 {strides = array<i32>} : memref<8x1xf32, #tpu.memory_space<vmem>>, vector<8x1xf32>,
      } else {
      }
      %9 = arith.index_cast %arg1 : i32 to index
      %c0 = arith.constant 0 : index
      %c0_4 = arith.constant 0 : index
      %10 = vector.load %arg9[%9, %c0, %c0_4] : memref<2x8x256xf32, #tpu.memory_space<vmem>>, vector<1x8x256xf32>
      %11 = vector.shape_cast %10 : vector<1x8x256xf32> to vector<8x256xf32>
      %c0_5 = arith.constant 0 : index
      %c0_6 = arith.constant 0 : index
      %12 = vector.load %arg12[%c0_5, %c0_6] : memref<8x1xf32, #tpu.memory_space<vmem>>, vector<8x1xf32>
      %13 = vector.broadcast %12 : vector<8x1xf32> to vector<8x256xf32>
      %14 = arith.mulf %11, %13 : vector<8x256xf32>
      %c0_7 = arith.constant 0 : index
      %c0_8 = arith.constant 0 : index
      %15 = vector.load %arg13[%c0_7, %c0_8] : memref<8x1xf32, #tpu.memory_space<vmem>>, vector<8x1xf32>
      %16 = vector.broadcast %15 : vector<8x1xf32> to vector<8x256xf32>
      %17 = arith.addf %14, %16 : vector<8x256xf32>
      %cst = arith.constant 0.000000e+00 : f32
      %18 = vector.broadcast %cst : f32 to vector<8x256xf32>
      %19 = arith.maximumf %17, %18 : vector<8x256xf32>
      %c0_9 = arith.constant 0 : index
      %c0_10 = arith.constant 0 : index
      %c0_11 = arith.constant 0 : index
      %20 = vector.load %arg8[%c0_9, %c0_10, %c0_11] : memref<1x8x256xf32, #tpu.memory_space<vmem>>, vector<1x8x256xf32>
      %21 = vector.shape_cast %20 : vector<1x8x256xf32> to vector<8x256xf32>
      %22 = vector.shape_cast %19 : vector<8x256xf32> to vector<1x8x256xf32>
      tpu.vector_store %arg8[%c0_9, %c0_10, %c0_11], %22 {strides = array<i32>} : memref<1x8x256xf32, #tpu.memory_space<vmem>>, vector<1x8x256xf32>,
    } else {
    }
    return
  }
  func.func @transform_0(%arg0: i32, %arg1: i32) -> (i32, i32, i32) {
    %c1_i32 = arith.constant 1 : i32
    %0 = arith.subi %c1_i32, %arg0 : i32
    %1 = arith.muli %0, %arg1 : i32
    %c0_i32 = arith.constant 0 : i32
    %c0_i32_0 = arith.constant 0 : i32
    %c0_i32_1 = arith.constant 0 : i32
    return %1, %c0_i32, %c0_i32_0 : i32, i32, i32
  }
  func.func @transform_1(%arg0: i32, %arg1: i32) -> (i32, i32, i32) {
    %c0_i32 = arith.constant 0 : i32
    %c0_i32_0 = arith.constant 0 : i32
    %c0_i32_1 = arith.constant 0 : i32
    %c0_i32_2 = arith.constant 0 : i32
    return %c0_i32, %c0_i32_0, %c0_i32_1 : i32, i32, i32
  }
  func.func @transform_2(%arg0: i32, %arg1: i32) -> (i32, i32) {
    %c0_i32 = arith.constant 0 : i32
    %c0_i32_0 = arith.constant 0 : i32
    %c0_i32_1 = arith.constant 0 : i32
    return %c0_i32, %c0_i32_0 : i32, i32
  }
  func.func @transform_3(%arg0: i32, %arg1: i32) -> (i32, i32) {
    %c0_i32 = arith.constant 0 : i32
    %c0_i32_0 = arith.constant 0 : i32
    %c0_i32_1 = arith.constant 0 : i32
    return %c0_i32, %c0_i32_0 : i32, i32
  }
  func.func @transform_4(%arg0: i32, %arg1: i32) -> (i32, i32) {
    %c0_i32 = arith.constant 0 : i32
    %c0_i32_0 = arith.constant 0 : i32
    %c0_i32_1 = arith.constant 0 : i32
    return %c0_i32, %c0_i32_0 : i32, i32
  }
  func.func @transform_5(%arg0: i32, %arg1: i32) -> (i32, i32) {
    %c0_i32 = arith.constant 0 : i32
    %c0_i32_0 = arith.constant 0 : i32
    %c0_i32_1 = arith.constant 0 : i32
    return %c0_i32, %c0_i32_0 : i32, i32
  }
  func.func @transform_6(%arg0: i32, %arg1: i32) -> (i32, i32, i32) {
    %0 = arith.muli %arg0, %arg1 : i32
    %c0_i32 = arith.constant 0 : i32
    %c0_i32_0 = arith.constant 0 : i32
    %c0_i32_1 = arith.constant 0 : i32
    return %0, %c0_i32, %c0_i32_0 : i32, i32, i32
  }
}

</mosaic_0001>

<llo_original>
// kernel: tpu_custom_call.1
$region0: #{tpu_custom_call.1}
  #allocation0 [shape = 'u32[]', space=smem, size = 0x4, offset = 0x4, fixed_abs, tag = 'smem constant byte address 0x4 - core index']
  #allocation1 [shape = 'u32[144,128]{1,0:T(1,128)}', space=vmem, size = 0x12000, scoped, tag = 'internal scratch']
  #allocation2 [shape = 'f32[2,8,256]{2,1,0:T(8,128)}', space=vmem, size = 0x4000, scoped, tag = 'scratch operand']
  #allocation3 [shape = 'f32[8,1]{1,0:T(8,128)}', space=vmem, size = 0x1000, scoped, tag = 'scratch operand']
  #allocation4 [shape = 'f32[8,1]{1,0:T(8,128)}', space=vmem, size = 0x1000, scoped, tag = 'scratch operand']
  #allocation5 [shape = 'f32[8,1]{1,0:T(8,128)}', space=vmem, size = 0x1000, scoped, tag = 'scratch operand']
  #allocation6 [shape = 'f32[8,1]{1,0:T(8,128)}', space=vmem, size = 0x1000, scoped, tag = 'scratch operand']
  %s0 = inlined_call_operand.vmem [shape: bf16[2,4,326], index: 0, kind: input, shape index: {}]
  %s1 = inlined_call_operand.vmem [shape: bf16[9,8,4], index: 1, kind: input, shape index: {}]
  %s2 = inlined_call_operand.hbm [shape: f32[288,256], index: 2, kind: input, shape index: {}]
  %s3 = inlined_call_operand.vmem [shape: f32[8,1], index: 3, kind: input, shape index: {}]
  %s4 = inlined_call_operand.vmem [shape: f32[8,1], index: 4, kind: input, shape index: {}]
  %s5 = inlined_call_operand.vmem [shape: f32[8,1], index: 5, kind: input, shape index: {}]
  %s6 = inlined_call_operand.hbm [shape: f32[2,8,256], index: 6, kind: output, shape index: {}]
  %s7 = sld [smem:[#allocation0]]
  $region77: #{tpu_custom_call.1} parent=0
    _
  %s9 = ssub.s32 1, %s7
  %s10 = scalar_select 0, %s9, %s7
  $region1: #{tpu_custom_call.1} parent=0
    #allocation7 [shape = 'u8[294912]{0}', space=vmem, size = 0x48000, scoped, tag = 'input window, operand 2, single buffered']
    #allocation8 [shape = 's32[2]{0}', space=sflag, size = 0x8, scoped, tag = 'scoped memory for tpu_custom_call.1']
    #allocation9 [shape = 's32[2]{0}', space=sflag, size = 0x8, scoped, tag = 'scoped memory for tpu_custom_call.1']
    #allocation10 [shape = 'u8[16384]{0}', space=vmem, size = 0x4000, scoped, tag = 'output window, operand 0']
    %11 = vsyncpa [#allocation8], 0
    %12 = vsyncpa [#allocation9], 0
    %s13 = scalar_lea.sflag [#allocation9], 1
    %14 = vsyncpa %s13, 0
    loop: start=0, step=1, limit=6
    $region2: #{tpu_custom_call.1} parent=1 // loop_pre_header
      _
    $region3: #{tpu_custom_call.1} parent=1 // loop_header
      %s16 = sphi 0, %s20
      %p17 = scmp.ge.s32.totalorder %s16, 6
      %s23 = sphi 0, %s35
      %s24 = sphi 0, %s31
      %s25 = sphi 0, %s23
      %s26 = sphi 0, %s24
      %s27 = sphi 0, %s25
      %s28 = sphi 0, %s26
      %s42 = sphi 0, %s44
      %s45 = sphi 0, %s42
      %s46 = sphi 0, %s45
      %s62 = sphi 0, %s46
      %s66 = sphi 0, %s66
      %s68 = sphi 0, %s66
      %s69 = sphi 0, %s68
      %s83 = sphi 0, %s69
      %s87 = sphi 0, %s87
      %s89 = sphi 0, %s87
      %s90 = sphi 0, %s89
      %s104 = sphi 0, %s90
      %s108 = sphi 0, %s108
      %s110 = sphi 0, %s108
      %s111 = sphi 0, %s110
      %s125 = sphi 0, %s111
      %s129 = sphi 0, %s129
      %s131 = sphi 0, %s129
      %s132 = sphi 0, %s131
      %s146 = sphi 0, %s132
      %s150 = sphi 0, %s150
      %s152 = sphi 0, %s150
      %s153 = sphi 0, %s152
      %s167 = sphi 0, %s153
      %s175 = sphi 0, %s177
      %s178 = sphi 0, %s175
      %s179 = sphi 0, %s178
      %s195 = sphi 0, %s179
    $region4: #{tpu_custom_call.1} parent=1 // loop_header_branch
      %19 = sbr.rel (%p17) target = $region8
    $region5: #{tpu_custom_call.1} parent=1 // loop_body
      %s21 = ssub.s32 %s16, 1
      %s22 = ssub.s32 %s16, 2
      %s29 = sadd.s32 1, %s24
      %p30 = scmp.ge.s32.totalorder %s29, 2
      %s31 = scalar_select %p30, 0, %s29
      %s32 = sadd.s32 1, %s23
      %s33 = scalar_select %p30, %s32, %s23
      %p34 = scmp.ge.s32.totalorder %s33, 2
      %s35 = scalar_select %p34, 0, %s33
      %s36 = ssub.s32 1, %s23
      %s37 = smul.u32 %s36, %s24
      %s38 = ssub.s32 1, %s35
      %s39 = smul.u32 %s38, %s31
      %s40 = ssub.s32 %s37, %s39
      %p41 = scmp.eq.s32.totalorder %s40, 0
      %s43 = sadd.s32 %s42, 1
      %s44 = scalar_select %p41, %s42, %s43
      %p47 = pneg %p41
      %p48 = scmp.eq.s32.totalorder %s16, 3
      %p49 = por %p47, %p48
      %p50 = scmp.ne.s32.totalorder %s42, %s45
      %p51 = scmp.eq.s32.totalorder %s16, 0
      %p52 = por %p50, %p51
      %p53 = scmp.ne.s32.totalorder %s42, %s45
      %p54 = scmp.eq.s32.totalorder %s21, 3
      %p55 = por %p53, %p54
      %p56 = scmp.ne.s32.totalorder %s45, %s46
      %p57 = scmp.eq.s32.totalorder %s21, 0
      %p58 = por %p56, %p57
      %p59 = scmp.ne.s32.totalorder %s45, %s46
      %p60 = scmp.eq.s32.totalorder %s22, 3
      %p61 = por %p59, %p60
      %p63 = scmp.ne.s32.totalorder %s46, %s62
      %p64 = scmp.eq.s32.totalorder %s22, 0
      %p65 = por %p63, %p64
      %s67 = sadd.s32 %s66, 1
      %p70 = scmp.eq.s32.totalorder %s16, 3
      %p71 = scmp.ne.s32.totalorder %s66, %s68
      %p72 = scmp.eq.s32.totalorder %s16, 0
      %p73 = por %p71, %p72
      %p74 = scmp.ne.s32.totalorder %s66, %s68
      %p75 = scmp.eq.s32.totalorder %s21, 3
      %p76 = por %p74, %p75
      %p77 = scmp.ne.s32.totalorder %s68, %s69
      %p78 = scmp.eq.s32.totalorder %s21, 0
      %p79 = por %p77, %p78
      %p80 = scmp.ne.s32.totalorder %s68, %s69
      %p81 = scmp.eq.s32.totalorder %s22, 3
      %p82 = por %p80, %p81
      %p84 = scmp.ne.s32.totalorder %s69, %s83
      %p85 = scmp.eq.s32.totalorder %s22, 0
      %p86 = por %p84, %p85
      %s88 = sadd.s32 %s87, 1
      %p91 = scmp.eq.s32.totalorder %s16, 3
      %p92 = scmp.ne.s32.totalorder %s87, %s89
      %p93 = scmp.eq.s32.totalorder %s16, 0
      %p94 = por %p92, %p93
      %p95 = scmp.ne.s32.totalorder %s87, %s89
      %p96 = scmp.eq.s32.totalorder %s21, 3
      %p97 = por %p95, %p96
      %p98 = scmp.ne.s32.totalorder %s89, %s90
      %p99 = scmp.eq.s32.totalorder %s21, 0
      %p100 = por %p98, %p99
      %p101 = scmp.ne.s32.totalorder %s89, %s90
      %p102 = scmp.eq.s32.totalorder %s22, 3
      %p103 = por %p101, %p102
      %p105 = scmp.ne.s32.totalorder %s90, %s104
      %p106 = scmp.eq.s32.totalorder %s22, 0
      %p107 = por %p105, %p106
      %s109 = sadd.s32 %s108, 1
      %p112 = scmp.eq.s32.totalorder %s16, 3
      %p113 = scmp.ne.s32.totalorder %s108, %s110
      %p114 = scmp.eq.s32.totalorder %s16, 0
      %p115 = por %p113, %p114
      %p116 = scmp.ne.s32.totalorder %s108, %s110
      %p117 = scmp.eq.s32.totalorder %s21, 3
      %p118 = por %p116, %p117
      %p119 = scmp.ne.s32.totalorder %s110, %s111
      %p120 = scmp.eq.s32.totalorder %s21, 0
      %p121 = por %p119, %p120
      %p122 = scmp.ne.s32.totalorder %s110, %s111
      %p123 = scmp.eq.s32.totalorder %s22, 3
      %p124 = por %p122, %p123
      %p126 = scmp.ne.s32.totalorder %s111, %s125
      %p127 = scmp.eq.s32.totalorder %s22, 0
      %p128 = por %p126, %p127
      %s130 = sadd.s32 %s129, 1
      %p133 = scmp.eq.s32.totalorder %s16, 3
      %p134 = scmp.ne.s32.totalorder %s129, %s131
      %p135 = scmp.eq.s32.totalorder %s16, 0
      %p136 = por %p134, %p135
      %p137 = scmp.ne.s32.totalorder %s129, %s131
      %p138 = scmp.eq.s32.totalorder %s21, 3
      %p139 = por %p137, %p138
      %p140 = scmp.ne.s32.totalorder %s131, %s132
      %p141 = scmp.eq.s32.totalorder %s21, 0
      %p142 = por %p140, %p141
      %p143 = scmp.ne.s32.totalorder %s131, %s132
      %p144 = scmp.eq.s32.totalorder %s22, 3
      %p145 = por %p143, %p144
      %p147 = scmp.ne.s32.totalorder %s132, %s146
      %p148 = scmp.eq.s32.totalorder %s22, 0
      %p149 = por %p147, %p148
      %s151 = sadd.s32 %s150, 1
      %p154 = scmp.eq.s32.totalorder %s16, 3
      %p155 = scmp.ne.s32.totalorder %s150, %s152
      %p156 = scmp.eq.s32.totalorder %s16, 0
      %p157 = por %p155, %p156
      %p158 = scmp.ne.s32.totalorder %s150, %s152
      %p159 = scmp.eq.s32.totalorder %s21, 3
      %p160 = por %p158, %p159
      %p161 = scmp.ne.s32.totalorder %s152, %s153
      %p162 = scmp.eq.s32.totalorder %s21, 0
      %p163 = por %p161, %p162
      %p164 = scmp.ne.s32.totalorder %s152, %s153
      %p165 = scmp.eq.s32.totalorder %s22, 3
      %p166 = por %p164, %p165
      %p168 = scmp.ne.s32.totalorder %s153, %s167
      %p169 = scmp.eq.s32.totalorder %s22, 0
      %p170 = por %p168, %p169
      %s171 = smul.u32 %s23, %s24
      %s172 = smul.u32 %s35, %s31
      %s173 = ssub.s32 %s171, %s172
      %p174 = scmp.eq.s32.totalorder %s173, 0
      %s176 = sadd.s32 %s175, 1
      %s177 = scalar_select %p174, %s175, %s176
      %p180 = pneg %p174
      %p181 = scmp.eq.s32.totalorder %s16, 3
      %p182 = por %p180, %p181
      %p183 = scmp.ne.s32.totalorder %s175, %s178
      %p184 = scmp.eq.s32.totalorder %s16, 0
      %p185 = por %p183, %p184
      %p186 = scmp.ne.s32.totalorder %s175, %s178
      %p187 = scmp.eq.s32.totalorder %s21, 3
      %p188 = por %p186, %p187
      %p189 = scmp.ne.s32.totalorder %s178, %s179
      %p190 = scmp.eq.s32.totalorder %s21, 0
      %p191 = por %p189, %p190
      %p192 = scmp.ne.s32.totalorder %s178, %s179
      %p193 = scmp.eq.s32.totalorder %s22, 3
      %p194 = por %p192, %p193
      %p196 = scmp.ne.s32.totalorder %s179, %s195
      %p197 = scmp.eq.s32.totalorder %s22, 0
      %p198 = por %p196, %p197
      %p199 = scmp.le.s32.totalorder 1, %s16
      %p200 = scmp.lt.s32.totalorder %s16, 5
      %p201 = pnand %p199, %p200
      %p202 = pneg %p201
      // Predicated region
      $region9: #{tpu_custom_call.1} parent=5 // pred_check
        _
      $region10: #{tpu_custom_call.1} parent=5 // pred_check_branch
        %204 = sbr.rel (%p201) target = $region12
      $region11: #{tpu_custom_call.1} parent=5 // pred_region
        %s205 = ssub.s32 %s16, 1
        // Predicated region
        $region13: #{tpu_custom_call.1} parent=11 // pred_check
          %p206 = pneg %p79
        $region14: #{tpu_custom_call.1} parent=11 // pred_check_branch
          %208 = sbr.rel (%p206) target = $region16
        $region15: #{tpu_custom_call.1} parent=11 // pred_region
          _
        $region16: #{tpu_custom_call.1} parent=11 // pred_fallthru
          _
        // Predicated region
        $region17: #{tpu_custom_call.1} parent=11 // pred_check
          %p209 = pneg %p100
        $region18: #{tpu_custom_call.1} parent=11 // pred_check_branch
          %211 = sbr.rel (%p209) target = $region20
        $region19: #{tpu_custom_call.1} parent=11 // pred_region
          %s213 = ssub.s32 9216, 9216
          %214 = vsyncadd [#allocation8], %s213
          %s215 = sshll.u32 [#allocation7], 4
          %s216 = int_to_ptr.vmem [resolvable:$true] %s215
          %221 = dma.hbm_to_vmem [thread:$0]  %s2, 9216, %s216, [#allocation8], 256, 256, 16
        $region20: #{tpu_custom_call.1} parent=11 // pred_fallthru
          _
        // Predicated region
        $region21: #{tpu_custom_call.1} parent=11 // pred_check
          %p222 = pneg %p121
        $region22: #{tpu_custom_call.1} parent=11 // pred_check_branch
          %224 = sbr.rel (%p222) target = $region24
        $region23: #{tpu_custom_call.1} parent=11 // pred_region
          _
        $region24: #{tpu_custom_call.1} parent=11 // pred_fallthru
          _
        // Predicated region
        $region25: #{tpu_custom_call.1} parent=11 // pred_check
          %p225 = pneg %p142
        $region26: #{tpu_custom_call.1} parent=11 // pred_check_branch
          %227 = sbr.rel (%p225) target = $region28
        $region27: #{tpu_custom_call.1} parent=11 // pred_region
          _
        $region28: #{tpu_custom_call.1} parent=11 // pred_fallthru
          _
        // Predicated region
        $region29: #{tpu_custom_call.1} parent=11 // pred_check
          %p228 = pneg %p163
        $region30: #{tpu_custom_call.1} parent=11 // pred_check_branch
          %230 = sbr.rel (%p228) target = $region32
        $region31: #{tpu_custom_call.1} parent=11 // pred_region
          _
        $region32: #{tpu_custom_call.1} parent=11 // pred_fallthru
          _
      $region12: #{tpu_custom_call.1} parent=5 // pred_fallthru
        _
      %p231 = scmp.lt.s32.totalorder %s16, 4
      // Predicated region
      $region33: #{tpu_custom_call.1} parent=5 // pred_check
        %p232 = pneg %p231
      $region34: #{tpu_custom_call.1} parent=5 // pred_check_branch
        %234 = sbr.rel (%p232) target = $region36
      $region35: #{tpu_custom_call.1} parent=5 // pred_region
        // Predicated region
        $region37: #{tpu_custom_call.1} parent=35 // pred_check
          %p235 = pneg %p52
        $region38: #{tpu_custom_call.1} parent=35 // pred_check_branch
          %237 = sbr.rel (%p235) target = $region40
        $region39: #{tpu_custom_call.1} parent=35 // pred_region
          %s238 = ssub.s32 1, %s23
          %s239 = smul.u32 %s238, %s24
          %p240 = scmp.lt.s32.totalorder %s239, 1
          %s241 = scalar_select %p240, %s239, 1
          %s242 = smul.addr %s241, 3
          %s243 = smul.addr %s242, 2
          %s244 = scalar_lea.vmem %s0, %s243
          %s245 = ssub.s32 1, %s23
          %s246 = smul.u32 %s245, %s24
        $region40: #{tpu_custom_call.1} parent=35 // pred_fallthru
          _
      $region36: #{tpu_custom_call.1} parent=5 // pred_fallthru
        _
      %p247 = scmp.le.s32.totalorder 1, %s16
      %p248 = scmp.lt.s32.totalorder %s16, 5
      %p249 = pnand %p247, %p248
      %p250 = pneg %p249
      // Predicated region
      $region41: #{tpu_custom_call.1} parent=5 // pred_check
        _
      $region42: #{tpu_custom_call.1} parent=5 // pred_check_branch
        %252 = sbr.rel (%p249) target = $region44
      $region43: #{tpu_custom_call.1} parent=5 // pred_region
        %s253 = ssub.s32 %s16, 1
        // Predicated region
        $region45: #{tpu_custom_call.1} parent=43 // pred_check
          %p254 = pneg %p100
        $region46: #{tpu_custom_call.1} parent=43 // pred_check_branch
          %256 = sbr.rel (%p254) target = $region48
        $region47: #{tpu_custom_call.1} parent=43 // pred_region
          %257 = dma.done [#allocation8], 9216
        $region48: #{tpu_custom_call.1} parent=43 // pred_fallthru
          _
        %s258 = ssub.s32 1, %s25
        %s259 = smul.u32 %s258, %s26
        %p260 = scmp.lt.s32.totalorder %s259, 1
        %s261 = scalar_select %p260, %s259, 1
        %s262 = smul.addr %s261, 3
        %s263 = smul.addr %s262, 2
        %s264 = scalar_lea.vmem %s0, %s263
        %p265 = pneg %p58
        %p266 = pneg %p55
        %p267 = pneg %p79
        %p268 = pneg %p76
        %p269 = pneg %p100
        %p270 = pneg %p97
        %p271 = pneg %p121
        %p272 = pneg %p118
        %p273 = pneg %p142
        %p274 = pneg %p139
        %p275 = pneg %p163
        %p276 = pneg %p160
        %p277 = pneg %p191
        %p278 = pneg %p188
        %s279 = sand.u32 %s178, 1
        %s280 = scalar_lea.sflag [#allocation9], %s279
        %s281 = sand.u32 %s178, 1
        %s282 = smul.addr %s281, 16
        %s283 = scalar_lea.vmem [#allocation10], %s282
        %s284 = ssub.s32 1, %s25
        %s285 = smul.u32 %s284, %s26
        %p286 = scmp.lt.s32.totalorder %s285, 1
        %s287 = scalar_select %p286, %s285, 1
        %s288 = smul.addr %s287, 3
        %s289 = smul.addr %s288, 2
        %s290 = scalar_lea.vmem %s0, %s289
        %s291 = ssub.s32 1, %s25
        %s292 = smul.u32 %s291, %s26
        %s293 = smul.u32 %s25, %s26
        %p295 = scmp.eq.s32.totalorder %s25, 0
        // Predicated region
        $region49: #{tpu_custom_call.1} parent=43 // pred_check
          %p296 = pneg %p295
        $region50: #{tpu_custom_call.1} parent=43 // pred_check_branch
          %298 = sbr.rel (%p296) target = $region52
        $region51: #{tpu_custom_call.1} parent=43 // pred_region
          %p299 = scmp.eq.s32.totalorder %s26, 0
          // Predicated region
          $region53: #{tpu_custom_call.1} parent=51 // pred_check
            %p300 = pneg %p299
          $region54: #{tpu_custom_call.1} parent=51 // pred_check_branch
            %302 = sbr.rel (%p300) target = $region56
          $region55: #{tpu_custom_call.1} parent=51 // pred_region
            %vm303 = vcmask 7168
            %304 = vst.msk [vmem:[#allocation3] sm:$0xff] %vm303, 0.0
            %305 = vst.msk [vmem:[#allocation4] sm:$0xff] %vm303, 0.0
          $region56: #{tpu_custom_call.1} parent=51 // pred_fallthru
            _
          %v306 = vld [vmem:[%s290] sm:$0x3f]
          %v307 = vld [vmem:[%s1] sm:$0xf]
          %s308 = scalar_lea.vmem %s1, 4
          %v309 = vld [vmem:[%s308] sm:$0xf]
          %v311 = vcombine.high %v306, %v306
          %v313 = vunpack.c.l.s4 1983009808
          %v314 = vunpack.c.0.s8 %v313
          %v315 = vlaneseq
          %v316 = vshrl.u32 %v315, 7
          %v317 = vsub.s32 %v314, %v316
          %v318 = vrot.slane %v306, %v317
          %v320 = vunpack.c.l.s4 1983009808
          %v321 = vunpack.c.0.s8 %v320
          %v322 = vlaneseq
          %v323 = vshrl.u32 %v322, 7
          %v324 = vsub.s32 %v321, %v323
          %v325 = vrot.slane %v311, %v324
          %v326 = vcombine.high %v318, %v318
          %327 = vrot.lane.b32.xlu0 %v318, 127
          %v328 = vpop.permute.xlu0 %327
          %329 = vrot.lane.b32.xlu0 %v326, 127
          %v330 = vpop.permute.xlu0 %329
          %331 = vrot.lane.b32.xlu0 %v325, 127
          %v332 = vpop.permute.xlu0 %331
          %vm333 = vcmask 1039360
          %v334 = vsel %vm333, %v328, %v330
          %v335 = vsel %vm333, %v330, %v332
          %vm336 = vcmask 31744
          %v338 = vsel %vm336, %v309, 0
          %vm340 = vcmask 1041408
          %v342 = vsel %vm340, %v334, 0
          %v345 = vsel %vm340, %v335, 0
          %v348 = vsel %vm340, %v332, 0
          %350 = vmatprep.subr.bf16.mxu0 0
          %351 = vmatpush1.bf16.msra.mxu0 0
          %352 = vmatprep.subr.bf16.mxu0 0
          %353 = vmatpush1.bf16.msra.mxu0 0
          %354 = vmatprep.subr.bf16.mxu0 0
          %355 = vmatpush1.bf16.msra.mxu0 0
          %356 = vmatprep.subr.bf16.mxu0 0
          %357 = vmatpush1.bf16.msra.mxu0 0
          %358 = vmatprep.subr.bf16.mxu0 0
          %359 = vmatpush1.bf16.msra.mxu0 0
          %360 = vmatprep.subr.bf16.mxu0 0
          %361 = vmatpush1.bf16.msra.mxu0 0
          %362 = vmatprep.subr.bf16.mxu0 0
          %363 = vmatpush1.bf16.msra.mxu0 0
          %364 = vmatprep.subr.bf16.mxu0 %v345
          %365 = vmatpush1.bf16.msra.mxu0 %v342
          %366 = vmatprep.subr.bf16.mxu0 0
          %367 = vmatpush2.bf16.msra.mxu0 0
          %368 = vmatprep.subr.bf16.mxu0 0
          %369 = vmatpush2.bf16.msra.mxu0 0
          %370 = vmatprep.subr.bf16.mxu0 0
          %371 = vmatpush2.bf16.msra.mxu0 0
          %372 = vmatprep.subr.bf16.mxu0 0
          %373 = vmatpush2.bf16.msra.mxu0 0
          %374 = vmatprep.subr.bf16.mxu0 0
          %375 = vmatpush2.bf16.msra.mxu0 0
          %376 = vmatprep.subr.bf16.mxu0 0
          %377 = vmatpush2.bf16.msra.mxu0 0
          %378 = vmatprep.subr.bf16.mxu0 0
          %379 = vmatpush2.bf16.msra.mxu0 0
          %380 = vmatprep.subr.bf16.mxu0 0
          %381 = vmatpush2.bf16.msra.mxu0 0
          %382 = vmatprep.mubr.bf16.mxu0 0
          %383 = vmatmul.mubr.bf16.gmra.mxu0 %v338
          %v384 = vpop.f32.mrf.mxu0
          %v385 = vadd.f32 0.0, %v384
          %v386 = vpop.f32.mrf.mxu0
          %v387 = vadd.f32 0.0, %v386
          %v388 = vpop.f32.mrf.mxu0
          %v389 = vpop.f32.mrf.mxu0
          %390 = vdwg.mxu0
          %391 = vmatprep.subr.bf16.mxu0 0
          %392 = vmatpush1.bf16.msra.mxu0 0
          %393 = vmatprep.subr.bf16.mxu0 0
          %394 = vmatpush1.bf16.msra.mxu0 0
          %395 = vmatprep.subr.bf16.mxu0 0
          %396 = vmatpush1.bf16.msra.mxu0 0
          %397 = vmatprep.subr.bf16.mxu0 0
          %398 = vmatpush1.bf16.msra.mxu0 0
          %399 = vmatprep.subr.bf16.mxu0 0
          %400 = vmatpush1.bf16.msra.mxu0 0
          %401 = vmatprep.subr.bf16.mxu0 0
          %402 = vmatpush1.bf16.msra.mxu0 0
          %403 = vmatprep.subr.bf16.mxu0 0
          %404 = vmatpush1.bf16.msra.mxu0 0
          %405 = vmatprep.subr.bf16.mxu0 0
          %406 = vmatpush1.bf16.msra.mxu0 %v348
          %407 = vmatprep.subr.bf16.mxu0 0
          %408 = vmatpush2.bf16.msra.mxu0 0
          %409 = vmatprep.subr.bf16.mxu0 0
          %410 = vmatpush2.bf16.msra.mxu0 0
          %411 = vmatprep.subr.bf16.mxu0 0
          %412 = vmatpush2.bf16.msra.mxu0 0
          %413 = vmatprep.subr.bf16.mxu0 0
          %414 = vmatpush2.bf16.msra.mxu0 0
          %415 = vmatprep.subr.bf16.mxu0 0
          %416 = vmatpush2.bf16.msra.mxu0 0
          %417 = vmatprep.subr.bf16.mxu0 0
          %418 = vmatpush2.bf16.msra.mxu0 0
          %419 = vmatprep.subr.bf16.mxu0 0
          %420 = vmatpush2.bf16.msra.mxu0 0
          %421 = vmatprep.subr.bf16.mxu0 0
          %422 = vmatpush2.bf16.msra.mxu0 0
          %423 = vmatprep.mubr.bf16.mxu0 0
          %424 = vmatmul.mubr.bf16.gmra.mxu0 %v338
          %v425 = vpop.f32.mrf.mxu0
          %v426 = vadd.f32 0.0, %v425
          %v427 = vpop.f32.mrf.mxu0
          %v428 = vpop.f32.mrf.mxu0
          %v429 = vpop.f32.mrf.mxu0
          %430 = vdwg.mxu0
          %v432 = vsel %vm336, %v307, 0
          %v435 = vsel %vm340, %v318, 0
          %v438 = vsel %vm340, %v326, 0
          %v441 = vsel %vm340, %v325, 0
          %443 = vmatprep.subr.bf16.mxu0 0
          %444 = vmatpush1.bf16.msra.mxu0 0
          %445 = vmatprep.subr.bf16.mxu0 0
          %446 = vmatpush1.bf16.msra.mxu0 0
          %447 = vmatprep.subr.bf16.mxu0 0
          %448 = vmatpush1.bf16.msra.mxu0 0
          %449 = vmatprep.subr.bf16.mxu0 0
          %450 = vmatpush1.bf16.msra.mxu0 0
          %451 = vmatprep.subr.bf16.mxu0 0
          %452 = vmatpush1.bf16.msra.mxu0 0
          %453 = vmatprep.subr.bf16.mxu0 0
          %454 = vmatpush1.bf16.msra.mxu0 0
          %455 = vmatprep.subr.bf16.mxu0 0
          %456 = vmatpush1.bf16.msra.mxu0 0
          %457 = vmatprep.subr.bf16.mxu0 %v438
          %458 = vmatpush1.bf16.msra.mxu0 %v435
          %459 = vmatprep.subr.bf16.mxu0 0
          %460 = vmatpush2.bf16.msra.mxu0 0
          %461 = vmatprep.subr.bf16.mxu0 0
          %462 = vmatpush2.bf16.msra.mxu0 0
          %463 = vmatprep.subr.bf16.mxu0 0
          %464 = vmatpush2.bf16.msra.mxu0 0
          %465 = vmatprep.subr.bf16.mxu0 0
          %466 = vmatpush2.bf16.msra.mxu0 0
          %467 = vmatprep.subr.bf16.mxu0 0
          %468 = vmatpush2.bf16.msra.mxu0 0
          %469 = vmatprep.subr.bf16.mxu0 0
          %470 = vmatpush2.bf16.msra.mxu0 0
          %471 = vmatprep.subr.bf16.mxu0 0
          %472 = vmatpush2.bf16.msra.mxu0 0
          %473 = vmatprep.subr.bf16.mxu0 0
          %474 = vmatpush2.bf16.msra.mxu0 0
          %475 = vmatprep.mubr.bf16.mxu0 0
          %476 = vmatmul.mubr.bf16.gmra.mxu0 %v432
          %v477 = vpop.f32.mrf.mxu0
          %v478 = vadd.f32 %v385, %v477
          %v479 = vpop.f32.mrf.mxu0
          %v480 = vadd.f32 %v387, %v479
          %v481 = vpop.f32.mrf.mxu0
          %v482 = vpop.f32.mrf.mxu0
          %483 = vdwg.mxu0
          %484 = vmatprep.subr.bf16.mxu0 0
          %485 = vmatpush1.bf16.msra.mxu0 0
          %486 = vmatprep.subr.bf16.mxu0 0
          %487 = vmatpush1.bf16.msra.mxu0 0
          %488 = vmatprep.subr.bf16.mxu0 0
          %489 = vmatpush1.bf16.msra.mxu0 0
          %490 = vmatprep.subr.bf16.mxu0 0
          %491 = vmatpush1.bf16.msra.mxu0 0
          %492 = vmatprep.subr.bf16.mxu0 0
          %493 = vmatpush1.bf16.msra.mxu0 0
          %494 = vmatprep.subr.bf16.mxu0 0
          %495 = vmatpush1.bf16.msra.mxu0 0
          %496 = vmatprep.subr.bf16.mxu0 0
          %497 = vmatpush1.bf16.msra.mxu0 0
          %498 = vmatprep.subr.bf16.mxu0 0
          %499 = vmatpush1.bf16.msra.mxu0 %v441
          %500 = vmatprep.subr.bf16.mxu0 0
          %501 = vmatpush2.bf16.msra.mxu0 0
          %502 = vmatprep.subr.bf16.mxu0 0
          %503 = vmatpush2.bf16.msra.mxu0 0
          %504 = vmatprep.subr.bf16.mxu0 0
          %505 = vmatpush2.bf16.msra.mxu0 0
          %506 = vmatprep.subr.bf16.mxu0 0
          %507 = vmatpush2.bf16.msra.mxu0 0
          %508 = vmatprep.subr.bf16.mxu0 0
          %509 = vmatpush2.bf16.msra.mxu0 0
          %510 = vmatprep.subr.bf16.mxu0 0
          %511 = vmatpush2.bf16.msra.mxu0 0
          %512 = vmatprep.subr.bf16.mxu0 0
          %513 = vmatpush2.bf16.msra.mxu0 0
          %514 = vmatprep.subr.bf16.mxu0 0
          %515 = vmatpush2.bf16.msra.mxu0 0
          %516 = vmatprep.mubr.bf16.mxu0 0
          %517 = vmatmul.mubr.bf16.gmra.mxu0 %v432
          %v518 = vpop.f32.mrf.mxu0
          %v519 = vadd.f32 %v426, %v518
          %v520 = vpop.f32.mrf.mxu0
          %v521 = vpop.f32.mrf.mxu0
          %v522 = vpop.f32.mrf.mxu0
          %523 = vdwg.mxu0
          %v524 = vld [vmem:[%s290] sm:$0x3f]
          %s525 = scalar_lea.vmem %s1, 8
          %v526 = vld [vmem:[%s525] sm:$0xf]
          %v528 = vcombine.high %v524, %v524
          %v530 = vunpack.c.l.s4 1983009808
          %v531 = vunpack.c.0.s8 %v530
          %v532 = vlaneseq
          %v533 = vshrl.u32 %v532, 7
          %v534 = vsub.s32 %v531, %v533
          %v535 = vrot.slane %v524, %v534
          %v537 = vunpack.c.l.s4 1983009808
          %v538 = vunpack.c.0.s8 %v537
          %v539 = vlaneseq
          %v540 = vshrl.u32 %v539, 7
          %v541 = vsub.s32 %v538, %v540
          %v542 = vrot.slane %v528, %v541
          %v543 = vcombine.high %v535, %v535
          %544 = vrot.lane.b32.xlu0 %v535, 126
          %v545 = vpop.permute.xlu0 %544
          %546 = vrot.lane.b32.xlu0 %v543, 126
          %v547 = vpop.permute.xlu0 %546
          %548 = vrot.lane.b32.xlu0 %v542, 126
          %v549 = vpop.permute.xlu0 %548
          %vm550 = vcmask 1031168
          %v551 = vsel %vm550, %v545, %v547
          %v552 = vsel %vm550, %v547, %v549
          %v554 = vsel %vm336, %v526, 0
          %v557 = vsel %vm340, %v551, 0
          %v560 = vsel %vm340, %v552, 0
          %v563 = vsel %vm340, %v549, 0
          %565 = vmatprep.subr.bf16.mxu0 0
          %566 = vmatpush1.bf16.msra.mxu0 0
          %567 = vmatprep.subr.bf16.mxu0 0
          %568 = vmatpush1.bf16.msra.mxu0 0
          %569 = vmatprep.subr.bf16.mxu0 0
          %570 = vmatpush1.bf16.msra.mxu0 0
          %571 = vmatprep.subr.bf16.mxu0 0
          %572 = vmatpush1.bf16.msra.mxu0 0
          %573 = vmatprep.subr.bf16.mxu0 0
          %574 = vmatpush1.bf16.msra.mxu0 0
          %575 = vmatprep.subr.bf16.mxu0 0
          %576 = vmatpush1.bf16.msra.mxu0 0
          %577 = vmatprep.subr.bf16.mxu0 0
          %578 = vmatpush1.bf16.msra.mxu0 0
          %579 = vmatprep.subr.bf16.mxu0 %v560
          %580 = vmatpush1.bf16.msra.mxu0 %v557
          %581 = vmatprep.subr.bf16.mxu0 0
          %582 = vmatpush2.bf16.msra.mxu0 0
          %583 = vmatprep.subr.bf16.mxu0 0
          %584 = vmatpush2.bf16.msra.mxu0 0
          %585 = vmatprep.subr.bf16.mxu0 0
          %586 = vmatpush2.bf16.msra.mxu0 0
          %587 = vmatprep.subr.bf16.mxu0 0
          %588 = vmatpush2.bf16.msra.mxu0 0
          %589 = vmatprep.subr.bf16.mxu0 0
          %590 = vmatpush2.bf16.msra.mxu0 0
          %591 = vmatprep.subr.bf16.mxu0 0
          %592 = vmatpush2.bf16.msra.mxu0 0
          %593 = vmatprep.subr.bf16.mxu0 0
          %594 = vmatpush2.bf16.msra.mxu0 0
          %595 = vmatprep.subr.bf16.mxu0 0
          %596 = vmatpush2.bf16.msra.mxu0 0
          %597 = vmatprep.mubr.bf16.mxu0 0
          %598 = vmatmul.mubr.bf16.gmra.mxu0 %v554
          %v599 = vpop.f32.mrf.mxu0
          %v600 = vadd.f32 0.0, %v599
          %v601 = vpop.f32.mrf.mxu0
          %v602 = vadd.f32 0.0, %v601
          %v603 = vpop.f32.mrf.mxu0
          %v604 = vpop.f32.mrf.mxu0
          %605 = vdwg.mxu0
          %606 = vmatprep.subr.bf16.mxu0 0
          %607 = vmatpush1.bf16.msra.mxu0 0
          %608 = vmatprep.subr.bf16.mxu0 0
          %609 = vmatpush1.bf16.msra.mxu0 0
          %610 = vmatprep.subr.bf16.mxu0 0
          %611 = vmatpush1.bf16.msra.mxu0 0
          %612 = vmatprep.subr.bf16.mxu0 0
          %613 = vmatpush1.bf16.msra.mxu0 0
          %614 = vmatprep.subr.bf16.mxu0 0
          %615 = vmatpush1.bf16.msra.mxu0 0
          %616 = vmatprep.subr.bf16.mxu0 0
          %617 = vmatpush1.bf16.msra.mxu0 0
          %618 = vmatprep.subr.bf16.mxu0 0
          %619 = vmatpush1.bf16.msra.mxu0 0
          %620 = vmatprep.subr.bf16.mxu0 0
          %621 = vmatpush1.bf16.msra.mxu0 %v563
          %622 = vmatprep.subr.bf16.mxu0 0
          %623 = vmatpush2.bf16.msra.mxu0 0
          %624 = vmatprep.subr.bf16.mxu0 0
          %625 = vmatpush2.bf16.msra.mxu0 0
          %626 = vmatprep.subr.bf16.mxu0 0
          %627 = vmatpush2.bf16.msra.mxu0 0
          %628 = vmatprep.subr.bf16.mxu0 0
          %629 = vmatpush2.bf16.msra.mxu0 0
          %630 = vmatprep.subr.bf16.mxu0 0
          %631 = vmatpush2.bf16.msra.mxu0 0
          %632 = vmatprep.subr.bf16.mxu0 0
          %633 = vmatpush2.bf16.msra.mxu0 0
          %634 = vmatprep.subr.bf16.mxu0 0
          %635 = vmatpush2.bf16.msra.mxu0 0
          %636 = vmatprep.subr.bf16.mxu0 0
          %637 = vmatpush2.bf16.msra.mxu0 0
          %638 = vmatprep.mubr.bf16.mxu0 0
          %639 = vmatmul.mubr.bf16.gmra.mxu0 %v554
          %v640 = vpop.f32.mrf.mxu0
          %v641 = vadd.f32 0.0, %v640
          %v642 = vpop.f32.mrf.mxu0
          %v643 = vpop.f32.mrf.mxu0
          %v644 = vpop.f32.mrf.mxu0
          %645 = vdwg.mxu0
          %v646 = vadd.f32 %v478, %v600
          %v647 = vadd.f32 %v480, %v602
          %v648 = vadd.f32 %v519, %v641
          %v649 = vld [vmem:[%s290] sm:$0x3f]
          %s650 = scalar_lea.vmem %s1, 12
          %v651 = vld [vmem:[%s650] sm:$0xf]
          %v653 = vcombine.high %v649, %v649
          %v655 = vunpack.c.l.s4 1983009808
          %v656 = vunpack.c.0.s8 %v655
          %v657 = vlaneseq
          %v658 = vshrl.u32 %v657, 7
          %v659 = vsub.s32 %v656, %v658
          %v660 = vrot.slane %v649, %v659
          %v662 = vunpack.c.l.s4 1983009808
          %v663 = vunpack.c.0.s8 %v662
          %v664 = vlaneseq
          %v665 = vshrl.u32 %v664, 7
          %v666 = vsub.s32 %v663, %v665
          %v667 = vrot.slane %v653, %v666
          %v668 = vcombine.high %v660, %v660
          %669 = vrot.lane.b32.xlu0 %v660, 110
          %v670 = vpop.permute.xlu0 %669
          %671 = vrot.lane.b32.xlu0 %v668, 110
          %v672 = vpop.permute.xlu0 %671
          %673 = vrot.lane.b32.xlu0 %v667, 110
          %v674 = vpop.permute.xlu0 %673
          %vm675 = vcmask 900096
          %v676 = vsel %vm675, %v670, %v672
          %v677 = vsel %vm675, %v672, %v674
          %v679 = vsel %vm336, %v651, 0
          %v682 = vsel %vm340, %v676, 0
          %v685 = vsel %vm340, %v677, 0
          %v688 = vsel %vm340, %v674, 0
          %690 = vmatprep.subr.bf16.mxu0 0
          %691 = vmatpush1.bf16.msra.mxu0 0
          %692 = vmatprep.subr.bf16.mxu0 0
          %693 = vmatpush1.bf16.msra.mxu0 0
          %694 = vmatprep.subr.bf16.mxu0 0
          %695 = vmatpush1.bf16.msra.mxu0 0
          %696 = vmatprep.subr.bf16.mxu0 0
          %697 = vmatpush1.bf16.msra.mxu0 0
          %698 = vmatprep.subr.bf16.mxu0 0
          %699 = vmatpush1.bf16.msra.mxu0 0
          %700 = vmatprep.subr.bf16.mxu0 0
          %701 = vmatpush1.bf16.msra.mxu0 0
          %702 = vmatprep.subr.bf16.mxu0 0
          %703 = vmatpush1.bf16.msra.mxu0 0
          %704 = vmatprep.subr.bf16.mxu0 %v685
          %705 = vmatpush1.bf16.msra.mxu0 %v682
          %706 = vmatprep.subr.bf16.mxu0 0
          %707 = vmatpush2.bf16.msra.mxu0 0
          %708 = vmatprep.subr.bf16.mxu0 0
          %709 = vmatpush2.bf16.msra.mxu0 0
          %710 = vmatprep.subr.bf16.mxu0 0
          %711 = vmatpush2.bf16.msra.mxu0 0
          %712 = vmatprep.subr.bf16.mxu0 0
          %713 = vmatpush2.bf16.msra.mxu0 0
          %714 = vmatprep.subr.bf16.mxu0 0
          %715 = vmatpush2.bf16.msra.mxu0 0
          %716 = vmatprep.subr.bf16.mxu0 0
          %717 = vmatpush2.bf16.msra.mxu0 0
          %718 = vmatprep.subr.bf16.mxu0 0
          %719 = vmatpush2.bf16.msra.mxu0 0
          %720 = vmatprep.subr.bf16.mxu0 0
          %721 = vmatpush2.bf16.msra.mxu0 0
          %722 = vmatprep.mubr.bf16.mxu0 0
          %723 = vmatmul.mubr.bf16.gmra.mxu0 %v679
          %v724 = vpop.f32.mrf.mxu0
          %v725 = vadd.f32 0.0, %v724
          %v726 = vpop.f32.mrf.mxu0
          %v727 = vadd.f32 0.0, %v726
          %v728 = vpop.f32.mrf.mxu0
          %v729 = vpop.f32.mrf.mxu0
          %730 = vdwg.mxu0
          %731 = vmatprep.subr.bf16.mxu0 0
          %732 = vmatpush1.bf16.msra.mxu0 0
          %733 = vmatprep.subr.bf16.mxu0 0
          %734 = vmatpush1.bf16.msra.mxu0 0
          %735 = vmatprep.subr.bf16.mxu0 0
          %736 = vmatpush1.bf16.msra.mxu0 0
          %737 = vmatprep.subr.bf16.mxu0 0
          %738 = vmatpush1.bf16.msra.mxu0 0
          %739 = vmatprep.subr.bf16.mxu0 0
          %740 = vmatpush1.bf16.msra.mxu0 0
          %741 = vmatprep.subr.bf16.mxu0 0
          %742 = vmatpush1.bf16.msra.mxu0 0
          %743 = vmatprep.subr.bf16.mxu0 0
          %744 = vmatpush1.bf16.msra.mxu0 0
          %745 = vmatprep.subr.bf16.mxu0 0
          %746 = vmatpush1.bf16.msra.mxu0 %v688
          %747 = vmatprep.subr.bf16.mxu0 0
          %748 = vmatpush2.bf16.msra.mxu0 0
          %749 = vmatprep.subr.bf16.mxu0 0
          %750 = vmatpush2.bf16.msra.mxu0 0
          %751 = vmatprep.subr.bf16.mxu0 0
          %752 = vmatpush2.bf16.msra.mxu0 0
          %753 = vmatprep.subr.bf16.mxu0 0
          %754 = vmatpush2.bf16.msra.mxu0 0
          %755 = vmatprep.subr.bf16.mxu0 0
          %756 = vmatpush2.bf16.msra.mxu0 0
          %757 = vmatprep.subr.bf16.mxu0 0
          %758 = vmatpush2.bf16.msra.mxu0 0
          %759 = vmatprep.subr.bf16.mxu0 0
          %760 = vmatpush2.bf16.msra.mxu0 0
          %761 = vmatprep.subr.bf16.mxu0 0
          %762 = vmatpush2.bf16.msra.mxu0 0
          %763 = vmatprep.mubr.bf16.mxu0 0
          %764 = vmatmul.mubr.bf16.gmra.mxu0 %v679
          %v765 = vpop.f32.mrf.mxu0
          %v766 = vadd.f32 0.0, %v765
          %v767 = vpop.f32.mrf.mxu0
          %v768 = vpop.f32.mrf.mxu0
          %v769 = vpop.f32.mrf.mxu0
          %770 = vdwg.mxu0
          %v771 = vadd.f32 %v646, %v725
          %v772 = vadd.f32 %v647, %v727
          %v773 = vadd.f32 %v648, %v766
          %v774 = vld [vmem:[%s290] sm:$0x3f]
          %s775 = scalar_lea.vmem %s1, 16
          %v776 = vld [vmem:[%s775] sm:$0xf]
          %v778 = vcombine.high %v774, %v774
          %v780 = vunpack.c.l.s4 1983009808
          %v781 = vunpack.c.0.s8 %v780
          %v782 = vlaneseq
          %v783 = vshrl.u32 %v782, 7
          %v784 = vsub.s32 %v781, %v783
          %v785 = vrot.slane %v774, %v784
          %v787 = vunpack.c.l.s4 1983009808
          %v788 = vunpack.c.0.s8 %v787
          %v789 = vlaneseq
          %v790 = vshrl.u32 %v789, 7
          %v791 = vsub.s32 %v788, %v790
          %v792 = vrot.slane %v778, %v791
          %v793 = vcombine.high %v785, %v785
          %794 = vrot.lane.b32.xlu0 %v785, 109
          %v795 = vpop.permute.xlu0 %794
          %796 = vrot.lane.b32.xlu0 %v793, 109
          %v797 = vpop.permute.xlu0 %796
          %798 = vrot.lane.b32.xlu0 %v792, 109
          %v799 = vpop.permute.xlu0 %798
          %vm800 = vcmask 891904
          %v801 = vsel %vm800, %v795, %v797
          %v802 = vsel %vm800, %v797, %v799
          %v804 = vsel %vm336, %v776, 0
          %v807 = vsel %vm340, %v801, 0
          %v810 = vsel %vm340, %v802, 0
          %v813 = vsel %vm340, %v799, 0
          %815 = vmatprep.subr.bf16.mxu0 0
          %816 = vmatpush1.bf16.msra.mxu0 0
          %817 = vmatprep.subr.bf16.mxu0 0
          %818 = vmatpush1.bf16.msra.mxu0 0
          %819 = vmatprep.subr.bf16.mxu0 0
          %820 = vmatpush1.bf16.msra.mxu0 0
          %821 = vmatprep.subr.bf16.mxu0 0
          %822 = vmatpush1.bf16.msra.mxu0 0
          %823 = vmatprep.subr.bf16.mxu0 0
          %824 = vmatpush1.bf16.msra.mxu0 0
          %825 = vmatprep.subr.bf16.mxu0 0
          %826 = vmatpush1.bf16.msra.mxu0 0
          %827 = vmatprep.subr.bf16.mxu0 0
          %828 = vmatpush1.bf16.msra.mxu0 0
          %829 = vmatprep.subr.bf16.mxu0 %v810
          %830 = vmatpush1.bf16.msra.mxu0 %v807
          %831 = vmatprep.subr.bf16.mxu0 0
          %832 = vmatpush2.bf16.msra.mxu0 0
          %833 = vmatprep.subr.bf16.mxu0 0
          %834 = vmatpush2.bf16.msra.mxu0 0
          %835 = vmatprep.subr.bf16.mxu0 0
          %836 = vmatpush2.bf16.msra.mxu0 0
          %837 = vmatprep.subr.bf16.mxu0 0
          %838 = vmatpush2.bf16.msra.mxu0 0
          %839 = vmatprep.subr.bf16.mxu0 0
          %840 = vmatpush2.bf16.msra.mxu0 0
          %841 = vmatprep.subr.bf16.mxu0 0
          %842 = vmatpush2.bf16.msra.mxu0 0
          %843 = vmatprep.subr.bf16.mxu0 0
          %844 = vmatpush2.bf16.msra.mxu0 0
          %845 = vmatprep.subr.bf16.mxu0 0
          %846 = vmatpush2.bf16.msra.mxu0 0
          %847 = vmatprep.mubr.bf16.mxu0 0
          %848 = vmatmul.mubr.bf16.gmra.mxu0 %v804
          %v849 = vpop.f32.mrf.mxu0
          %v850 = vadd.f32 0.0, %v849
          %v851 = vpop.f32.mrf.mxu0
          %v852 = vadd.f32 0.0, %v851
          %v853 = vpop.f32.mrf.mxu0
          %v854 = vpop.f32.mrf.mxu0
          %855 = vdwg.mxu0
          %856 = vmatprep.subr.bf16.mxu0 0
          %857 = vmatpush1.bf16.msra.mxu0 0
          %858 = vmatprep.subr.bf16.mxu0 0
          %859 = vmatpush1.bf16.msra.mxu0 0
          %860 = vmatprep.subr.bf16.mxu0 0
          %861 = vmatpush1.bf16.msra.mxu0 0
          %862 = vmatprep.subr.bf16.mxu0 0
          %863 = vmatpush1.bf16.msra.mxu0 0
          %864 = vmatprep.subr.bf16.mxu0 0
          %865 = vmatpush1.bf16.msra.mxu0 0
          %866 = vmatprep.subr.bf16.mxu0 0
          %867 = vmatpush1.bf16.msra.mxu0 0
          %868 = vmatprep.subr.bf16.mxu0 0
          %869 = vmatpush1.bf16.msra.mxu0 0
          %870 = vmatprep.subr.bf16.mxu0 0
          %871 = vmatpush1.bf16.msra.mxu0 %v813
          %872 = vmatprep.subr.bf16.mxu0 0
          %873 = vmatpush2.bf16.msra.mxu0 0
          %874 = vmatprep.subr.bf16.mxu0 0
          %875 = vmatpush2.bf16.msra.mxu0 0
          %876 = vmatprep.subr.bf16.mxu0 0
          %877 = vmatpush2.bf16.msra.mxu0 0
          %878 = vmatprep.subr.bf16.mxu0 0
          %879 = vmatpush2.bf16.msra.mxu0 0
          %880 = vmatprep.subr.bf16.mxu0 0
          %881 = vmatpush2.bf16.msra.mxu0 0
          %882 = vmatprep.subr.bf16.mxu0 0
          %883 = vmatpush2.bf16.msra.mxu0 0
          %884 = vmatprep.subr.bf16.mxu0 0
          %885 = vmatpush2.bf16.msra.mxu0 0
          %886 = vmatprep.subr.bf16.mxu0 0
          %887 = vmatpush2.bf16.msra.mxu0 0
          %888 = vmatprep.mubr.bf16.mxu0 0
          %889 = vmatmul.mubr.bf16.gmra.mxu0 %v804
          %v890 = vpop.f32.mrf.mxu0
          %v891 = vadd.f32 0.0, %v890
          %v892 = vpop.f32.mrf.mxu0
          %v893 = vpop.f32.mrf.mxu0
          %v894 = vpop.f32.mrf.mxu0
          %895 = vdwg.mxu0
          %v896 = vadd.f32 %v771, %v850
          %v897 = vadd.f32 %v772, %v852
          %v898 = vadd.f32 %v773, %v891
          %v899 = vld [vmem:[%s290] sm:$0x3f]
          %s900 = scalar_lea.vmem %s1, 20
          %v901 = vld [vmem:[%s900] sm:$0xf]
          %v903 = vcombine.high %v899, %v899
          %v905 = vunpack.c.l.s4 1983009808
          %v906 = vunpack.c.0.s8 %v905
          %v907 = vlaneseq
          %v908 = vshrl.u32 %v907, 7
          %v909 = vsub.s32 %v906, %v908
          %v910 = vrot.slane %v899, %v909
          %v912 = vunpack.c.l.s4 1983009808
          %v913 = vunpack.c.0.s8 %v912
          %v914 = vlaneseq
          %v915 = vshrl.u32 %v914, 7
          %v916 = vsub.s32 %v913, %v915
          %v917 = vrot.slane %v903, %v916
          %v918 = vcombine.high %v910, %v910
          %919 = vrot.lane.b32.xlu0 %v910, 108
          %v920 = vpop.permute.xlu0 %919
          %921 = vrot.lane.b32.xlu0 %v918, 108
          %v922 = vpop.permute.xlu0 %921
          %923 = vrot.lane.b32.xlu0 %v917, 108
          %v924 = vpop.permute.xlu0 %923
          %vm925 = vcmask 883712
          %v926 = vsel %vm925, %v920, %v922
          %v927 = vsel %vm925, %v922, %v924
          %v929 = vsel %vm336, %v901, 0
          %v932 = vsel %vm340, %v926, 0
          %v935 = vsel %vm340, %v927, 0
          %v938 = vsel %vm340, %v924, 0
          %940 = vmatprep.subr.bf16.mxu0 0
          %941 = vmatpush1.bf16.msra.mxu0 0
          %942 = vmatprep.subr.bf16.mxu0 0
          %943 = vmatpush1.bf16.msra.mxu0 0
          %944 = vmatprep.subr.bf16.mxu0 0
          %945 = vmatpush1.bf16.msra.mxu0 0
          %946 = vmatprep.subr.bf16.mxu0 0
          %947 = vmatpush1.bf16.msra.mxu0 0
          %948 = vmatprep.subr.bf16.mxu0 0
          %949 = vmatpush1.bf16.msra.mxu0 0
          %950 = vmatprep.subr.bf16.mxu0 0
          %951 = vmatpush1.bf16.msra.mxu0 0
          %952 = vmatprep.subr.bf16.mxu0 0
          %953 = vmatpush1.bf16.msra.mxu0 0
          %954 = vmatprep.subr.bf16.mxu0 %v935
          %955 = vmatpush1.bf16.msra.mxu0 %v932
          %956 = vmatprep.subr.bf16.mxu0 0
          %957 = vmatpush2.bf16.msra.mxu0 0
          %958 = vmatprep.subr.bf16.mxu0 0
          %959 = vmatpush2.bf16.msra.mxu0 0
          %960 = vmatprep.subr.bf16.mxu0 0
          %961 = vmatpush2.bf16.msra.mxu0 0
          %962 = vmatprep.subr.bf16.mxu0 0
          %963 = vmatpush2.bf16.msra.mxu0 0
          %964 = vmatprep.subr.bf16.mxu0 0
          %965 = vmatpush2.bf16.msra.mxu0 0
          %966 = vmatprep.subr.bf16.mxu0 0
          %967 = vmatpush2.bf16.msra.mxu0 0
          %968 = vmatprep.subr.bf16.mxu0 0
          %969 = vmatpush2.bf16.msra.mxu0 0
          %970 = vmatprep.subr.bf16.mxu0 0
          %971 = vmatpush2.bf16.msra.mxu0 0
          %972 = vmatprep.mubr.bf16.mxu0 0
          %973 = vmatmul.mubr.bf16.gmra.mxu0 %v929
          %v974 = vpop.f32.mrf.mxu0
          %v975 = vadd.f32 0.0, %v974
          %v976 = vpop.f32.mrf.mxu0
          %v977 = vadd.f32 0.0, %v976
          %v978 = vpop.f32.mrf.mxu0
          %v979 = vpop.f32.mrf.mxu0
          %980 = vdwg.mxu0
          %981 = vmatprep.subr.bf16.mxu0 0
          %982 = vmatpush1.bf16.msra.mxu0 0
          %983 = vmatprep.subr.bf16.mxu0 0
          %984 = vmatpush1.bf16.msra.mxu0 0
          %985 = vmatprep.subr.bf16.mxu0 0
          %986 = vmatpush1.bf16.msra.mxu0 0
          %987 = vmatprep.subr.bf16.mxu0 0
          %988 = vmatpush1.bf16.msra.mxu0 0
          %989 = vmatprep.subr.bf16.mxu0 0
          %990 = vmatpush1.bf16.msra.mxu0 0
          %991 = vmatprep.subr.bf16.mxu0 0
          %992 = vmatpush1.bf16.msra.mxu0 0
          %993 = vmatprep.subr.bf16.mxu0 0
          %994 = vmatpush1.bf16.msra.mxu0 0
          %995 = vmatprep.subr.bf16.mxu0 0
          %996 = vmatpush1.bf16.msra.mxu0 %v938
          %997 = vmatprep.subr.bf16.mxu0 0
          %998 = vmatpush2.bf16.msra.mxu0 0
          %999 = vmatprep.subr.bf16.mxu0 0
          %1000 = vmatpush2.bf16.msra.mxu0 0
          %1001 = vmatprep.subr.bf16.mxu0 0
          %1002 = vmatpush2.bf16.msra.mxu0 0
          %1003 = vmatprep.subr.bf16.mxu0 0
          %1004 = vmatpush2.bf16.msra.mxu0 0
          %1005 = vmatprep.subr.bf16.mxu0 0
          %1006 = vmatpush2.bf16.msra.mxu0 0
          %1007 = vmatprep.subr.bf16.mxu0 0
          %1008 = vmatpush2.bf16.msra.mxu0 0
          %1009 = vmatprep.subr.bf16.mxu0 0
          %1010 = vmatpush2.bf16.msra.mxu0 0
          %1011 = vmatprep.subr.bf16.mxu0 0
          %1012 = vmatpush2.bf16.msra.mxu0 0
          %1013 = vmatprep.mubr.bf16.mxu0 0
          %1014 = vmatmul.mubr.bf16.gmra.mxu0 %v929
          %v1015 = vpop.f32.mrf.mxu0
          %v1016 = vadd.f32 0.0, %v1015
          %v1017 = vpop.f32.mrf.mxu0
          %v1018 = vpop.f32.mrf.mxu0
          %v1019 = vpop.f32.mrf.mxu0
          %1020 = vdwg.mxu0
          %v1021 = vadd.f32 %v896, %v975
          %v1022 = vadd.f32 %v897, %v977
          %v1023 = vadd.f32 %v898, %v1016
          %v1024 = vld [vmem:[%s290] sm:$0x3f]
          %s1025 = scalar_lea.vmem %s1, 24
          %v1026 = vld [vmem:[%s1025] sm:$0xf]
          %v1028 = vcombine.high %v1024, %v1024
          %v1030 = vunpack.c.l.s4 1983009808
          %v1031 = vunpack.c.0.s8 %v1030
          %v1032 = vlaneseq
          %v1033 = vshrl.u32 %v1032, 7
          %v1034 = vsub.s32 %v1031, %v1033
          %v1035 = vrot.slane %v1024, %v1034
          %v1037 = vunpack.c.l.s4 1983009808
          %v1038 = vunpack.c.0.s8 %v1037
          %v1039 = vlaneseq
          %v1040 = vshrl.u32 %v1039, 7
          %v1041 = vsub.s32 %v1038, %v1040
          %v1042 = vrot.slane %v1028, %v1041
          %v1043 = vcombine.high %v1035, %v1035
          %1044 = vrot.lane.b32.xlu0 %v1035, 92
          %v1045 = vpop.permute.xlu0 %1044
          %1046 = vrot.lane.b32.xlu0 %v1043, 92
          %v1047 = vpop.permute.xlu0 %1046
          %1048 = vrot.lane.b32.xlu0 %v1042, 92
          %v1049 = vpop.permute.xlu0 %1048
          %vm1050 = vcmask 752640
          %v1051 = vsel %vm1050, %v1045, %v1047
          %v1052 = vsel %vm1050, %v1047, %v1049
          %v1054 = vsel %vm336, %v1026, 0
          %v1057 = vsel %vm340, %v1051, 0
          %v1060 = vsel %vm340, %v1052, 0
          %v1063 = vsel %vm340, %v1049, 0
          %1065 = vmatprep.subr.bf16.mxu0 0
          %1066 = vmatpush1.bf16.msra.mxu0 0
          %1067 = vmatprep.subr.bf16.mxu0 0
          %1068 = vmatpush1.bf16.msra.mxu0 0
          %1069 = vmatprep.subr.bf16.mxu0 0
          %1070 = vmatpush1.bf16.msra.mxu0 0
          %1071 = vmatprep.subr.bf16.mxu0 0
          %1072 = vmatpush1.bf16.msra.mxu0 0
          %1073 = vmatprep.subr.bf16.mxu0 0
          %1074 = vmatpush1.bf16.msra.mxu0 0
          %1075 = vmatprep.subr.bf16.mxu0 0
          %1076 = vmatpush1.bf16.msra.mxu0 0
          %1077 = vmatprep.subr.bf16.mxu0 0
          %1078 = vmatpush1.bf16.msra.mxu0 0
          %1079 = vmatprep.subr.bf16.mxu0 %v1060
          %1080 = vmatpush1.bf16.msra.mxu0 %v1057
          %1081 = vmatprep.subr.bf16.mxu0 0
          %1082 = vmatpush2.bf16.msra.mxu0 0
          %1083 = vmatprep.subr.bf16.mxu0 0
          %1084 = vmatpush2.bf16.msra.mxu0 0
          %1085 = vmatprep.subr.bf16.mxu0 0
          %1086 = vmatpush2.bf16.msra.mxu0 0
          %1087 = vmatprep.subr.bf16.mxu0 0
          %1088 = vmatpush2.bf16.msra.mxu0 0
          %1089 = vmatprep.subr.bf16.mxu0 0
          %1090 = vmatpush2.bf16.msra.mxu0 0
          %1091 = vmatprep.subr.bf16.mxu0 0
          %1092 = vmatpush2.bf16.msra.mxu0 0
          %1093 = vmatprep.subr.bf16.mxu0 0
          %1094 = vmatpush2.bf16.msra.mxu0 0
          %1095 = vmatprep.subr.bf16.mxu0 0
          %1096 = vmatpush2.bf16.msra.mxu0 0
          %1097 = vmatprep.mubr.bf16.mxu0 0
          %1098 = vmatmul.mubr.bf16.gmra.mxu0 %v1054
          %v1099 = vpop.f32.mrf.mxu0
          %v1100 = vadd.f32 0.0, %v1099
          %v1101 = vpop.f32.mrf.mxu0
          %v1102 = vadd.f32 0.0, %v1101
          %v1103 = vpop.f32.mrf.mxu0
          %v1104 = vpop.f32.mrf.mxu0
          %1105 = vdwg.mxu0
          %1106 = vmatprep.subr.bf16.mxu0 0
          %1107 = vmatpush1.bf16.msra.mxu0 0
          %1108 = vmatprep.subr.bf16.mxu0 0
          %1109 = vmatpush1.bf16.msra.mxu0 0
          %1110 = vmatprep.subr.bf16.mxu0 0
          %1111 = vmatpush1.bf16.msra.mxu0 0
          %1112 = vmatprep.subr.bf16.mxu0 0
          %1113 = vmatpush1.bf16.msra.mxu0 0
          %1114 = vmatprep.subr.bf16.mxu0 0
          %1115 = vmatpush1.bf16.msra.mxu0 0
          %1116 = vmatprep.subr.bf16.mxu0 0
          %1117 = vmatpush1.bf16.msra.mxu0 0
          %1118 = vmatprep.subr.bf16.mxu0 0
          %1119 = vmatpush1.bf16.msra.mxu0 0
          %1120 = vmatprep.subr.bf16.mxu0 0
          %1121 = vmatpush1.bf16.msra.mxu0 %v1063
          %1122 = vmatprep.subr.bf16.mxu0 0
          %1123 = vmatpush2.bf16.msra.mxu0 0
          %1124 = vmatprep.subr.bf16.mxu0 0
          %1125 = vmatpush2.bf16.msra.mxu0 0
          %1126 = vmatprep.subr.bf16.mxu0 0
          %1127 = vmatpush2.bf16.msra.mxu0 0
          %1128 = vmatprep.subr.bf16.mxu0 0
          %1129 = vmatpush2.bf16.msra.mxu0 0
          %1130 = vmatprep.subr.bf16.mxu0 0
          %1131 = vmatpush2.bf16.msra.mxu0 0
          %1132 = vmatprep.subr.bf16.mxu0 0
          %1133 = vmatpush2.bf16.msra.mxu0 0
          %1134 = vmatprep.subr.bf16.mxu0 0
          %1135 = vmatpush2.bf16.msra.mxu0 0
          %1136 = vmatprep.subr.bf16.mxu0 0
          %1137 = vmatpush2.bf16.msra.mxu0 0
          %1138 = vmatprep.mubr.bf16.mxu0 0
          %1139 = vmatmul.mubr.bf16.gmra.mxu0 %v1054
          %v1140 = vpop.f32.mrf.mxu0
          %v1141 = vadd.f32 0.0, %v1140
          %v1142 = vpop.f32.mrf.mxu0
          %v1143 = vpop.f32.mrf.mxu0
          %v1144 = vpop.f32.mrf.mxu0
          %1145 = vdwg.mxu0
          %v1146 = vadd.f32 %v1021, %v1100
          %v1147 = vadd.f32 %v1022, %v1102
          %v1148 = vadd.f32 %v1023, %v1141
          %v1149 = vld [vmem:[%s290] sm:$0x3f]
          %s1150 = scalar_lea.vmem %s1, 28
          %v1151 = vld [vmem:[%s1150] sm:$0xf]
          %v1153 = vcombine.high %v1149, %v1149
          %v1155 = vunpack.c.l.s4 1983009808
          %v1156 = vunpack.c.0.s8 %v1155
          %v1157 = vlaneseq
          %v1158 = vshrl.u32 %v1157, 7
          %v1159 = vsub.s32 %v1156, %v1158
          %v1160 = vrot.slane %v1149, %v1159
          %v1162 = vunpack.c.l.s4 1983009808
          %v1163 = vunpack.c.0.s8 %v1162
          %v1164 = vlaneseq
          %v1165 = vshrl.u32 %v1164, 7
          %v1166 = vsub.s32 %v1163, %v1165
          %v1167 = vrot.slane %v1153, %v1166
          %v1168 = vcombine.high %v1160, %v1160
          %1169 = vrot.lane.b32.xlu0 %v1160, 91
          %v1170 = vpop.permute.xlu0 %1169
          %1171 = vrot.lane.b32.xlu0 %v1168, 91
          %v1172 = vpop.permute.xlu0 %1171
          %1173 = vrot.lane.b32.xlu0 %v1167, 91
          %v1174 = vpop.permute.xlu0 %1173
          %vm1175 = vcmask 744448
          %v1176 = vsel %vm1175, %v1170, %v1172
          %v1177 = vsel %vm1175, %v1172, %v1174
          %v1179 = vsel %vm336, %v1151, 0
          %v1182 = vsel %vm340, %v1176, 0
          %v1185 = vsel %vm340, %v1177, 0
          %v1188 = vsel %vm340, %v1174, 0
          %1190 = vmatprep.subr.bf16.mxu0 0
          %1191 = vmatpush1.bf16.msra.mxu0 0
          %1192 = vmatprep.subr.bf16.mxu0 0
          %1193 = vmatpush1.bf16.msra.mxu0 0
          %1194 = vmatprep.subr.bf16.mxu0 0
          %1195 = vmatpush1.bf16.msra.mxu0 0
          %1196 = vmatprep.subr.bf16.mxu0 0
          %1197 = vmatpush1.bf16.msra.mxu0 0
          %1198 = vmatprep.subr.bf16.mxu0 0
          %1199 = vmatpush1.bf16.msra.mxu0 0
          %1200 = vmatprep.subr.bf16.mxu0 0
          %1201 = vmatpush1.bf16.msra.mxu0 0
          %1202 = vmatprep.subr.bf16.mxu0 0
          %1203 = vmatpush1.bf16.msra.mxu0 0
          %1204 = vmatprep.subr.bf16.mxu0 %v1185
          %1205 = vmatpush1.bf16.msra.mxu0 %v1182
          %1206 = vmatprep.subr.bf16.mxu0 0
          %1207 = vmatpush2.bf16.msra.mxu0 0
          %1208 = vmatprep.subr.bf16.mxu0 0
          %1209 = vmatpush2.bf16.msra.mxu0 0
          %1210 = vmatprep.subr.bf16.mxu0 0
          %1211 = vmatpush2.bf16.msra.mxu0 0
          %1212 = vmatprep.subr.bf16.mxu0 0
          %1213 = vmatpush2.bf16.msra.mxu0 0
          %1214 = vmatprep.subr.bf16.mxu0 0
          %1215 = vmatpush2.bf16.msra.mxu0 0
          %1216 = vmatprep.subr.bf16.mxu0 0
          %1217 = vmatpush2.bf16.msra.mxu0 0
          %1218 = vmatprep.subr.bf16.mxu0 0
          %1219 = vmatpush2.bf16.msra.mxu0 0
          %1220 = vmatprep.subr.bf16.mxu0 0
          %1221 = vmatpush2.bf16.msra.mxu0 0
          %1222 = vmatprep.mubr.bf16.mxu0 0
          %1223 = vmatmul.mubr.bf16.gmra.mxu0 %v1179
          %v1224 = vpop.f32.mrf.mxu0
          %v1225 = vadd.f32 0.0, %v1224
          %v1226 = vpop.f32.mrf.mxu0
          %v1227 = vadd.f32 0.0, %v1226
          %v1228 = vpop.f32.mrf.mxu0
          %v1229 = vpop.f32.mrf.mxu0
          %1230 = vdwg.mxu0
          %1231 = vmatprep.subr.bf16.mxu0 0
          %1232 = vmatpush1.bf16.msra.mxu0 0
          %1233 = vmatprep.subr.bf16.mxu0 0
          %1234 = vmatpush1.bf16.msra.mxu0 0
          %1235 = vmatprep.subr.bf16.mxu0 0
          %1236 = vmatpush1.bf16.msra.mxu0 0
          %1237 = vmatprep.subr.bf16.mxu0 0
          %1238 = vmatpush1.bf16.msra.mxu0 0
          %1239 = vmatprep.subr.bf16.mxu0 0
          %1240 = vmatpush1.bf16.msra.mxu0 0
          %1241 = vmatprep.subr.bf16.mxu0 0
          %1242 = vmatpush1.bf16.msra.mxu0 0
          %1243 = vmatprep.subr.bf16.mxu0 0
          %1244 = vmatpush1.bf16.msra.mxu0 0
          %1245 = vmatprep.subr.bf16.mxu0 0
          %1246 = vmatpush1.bf16.msra.mxu0 %v1188
          %1247 = vmatprep.subr.bf16.mxu0 0
          %1248 = vmatpush2.bf16.msra.mxu0 0
          %1249 = vmatprep.subr.bf16.mxu0 0
          %1250 = vmatpush2.bf16.msra.mxu0 0
          %1251 = vmatprep.subr.bf16.mxu0 0
          %1252 = vmatpush2.bf16.msra.mxu0 0
          %1253 = vmatprep.subr.bf16.mxu0 0
          %1254 = vmatpush2.bf16.msra.mxu0 0
          %1255 = vmatprep.subr.bf16.mxu0 0
          %1256 = vmatpush2.bf16.msra.mxu0 0
          %1257 = vmatprep.subr.bf16.mxu0 0
          %1258 = vmatpush2.bf16.msra.mxu0 0
          %1259 = vmatprep.subr.bf16.mxu0 0
          %1260 = vmatpush2.bf16.msra.mxu0 0
          %1261 = vmatprep.subr.bf16.mxu0 0
          %1262 = vmatpush2.bf16.msra.mxu0 0
          %1263 = vmatprep.mubr.bf16.mxu0 0
          %1264 = vmatmul.mubr.bf16.gmra.mxu0 %v1179
          %v1265 = vpop.f32.mrf.mxu0
          %v1266 = vadd.f32 0.0, %v1265
          %v1267 = vpop.f32.mrf.mxu0
          %v1268 = vpop.f32.mrf.mxu0
          %v1269 = vpop.f32.mrf.mxu0
          %1270 = vdwg.mxu0
          %v1271 = vadd.f32 %v1146, %v1225
          %v1272 = vadd.f32 %v1147, %v1227
          %v1273 = vadd.f32 %v1148, %v1266
          %v1274 = vld [vmem:[%s290] sm:$0x3f]
          %s1275 = scalar_lea.vmem %s1, 32
          %v1276 = vld [vmem:[%s1275] sm:$0xf]
          %v1278 = vcombine.high %v1274, %v1274
          %v1280 = vunpack.c.l.s4 1983009808
          %v1281 = vunpack.c.0.s8 %v1280
          %v1282 = vlaneseq
          %v1283 = vshrl.u32 %v1282, 7
          %v1284 = vsub.s32 %v1281, %v1283
          %v1285 = vrot.slane %v1274, %v1284
          %v1287 = vunpack.c.l.s4 1983009808
          %v1288 = vunpack.c.0.s8 %v1287
          %v1289 = vlaneseq
          %v1290 = vshrl.u32 %v1289, 7
          %v1291 = vsub.s32 %v1288, %v1290
          %v1292 = vrot.slane %v1278, %v1291
          %v1293 = vcombine.high %v1285, %v1285
          %1294 = vrot.lane.b32.xlu0 %v1285, 90
          %v1295 = vpop.permute.xlu0 %1294
          %1296 = vrot.lane.b32.xlu0 %v1293, 90
          %v1297 = vpop.permute.xlu0 %1296
          %1298 = vrot.lane.b32.xlu0 %v1292, 90
          %v1299 = vpop.permute.xlu0 %1298
          %vm1300 = vcmask 736256
          %v1301 = vsel %vm1300, %v1295, %v1297
          %v1302 = vsel %vm1300, %v1297, %v1299
          %v1304 = vsel %vm336, %v1276, 0
          %v1307 = vsel %vm340, %v1301, 0
          %v1310 = vsel %vm340, %v1302, 0
          %v1313 = vsel %vm340, %v1299, 0
          %1315 = vmatprep.subr.bf16.mxu0 0
          %1316 = vmatpush1.bf16.msra.mxu0 0
          %1317 = vmatprep.subr.bf16.mxu0 0
          %1318 = vmatpush1.bf16.msra.mxu0 0
          %1319 = vmatprep.subr.bf16.mxu0 0
          %1320 = vmatpush1.bf16.msra.mxu0 0
          %1321 = vmatprep.subr.bf16.mxu0 0
          %1322 = vmatpush1.bf16.msra.mxu0 0
          %1323 = vmatprep.subr.bf16.mxu0 0
          %1324 = vmatpush1.bf16.msra.mxu0 0
          %1325 = vmatprep.subr.bf16.mxu0 0
          %1326 = vmatpush1.bf16.msra.mxu0 0
          %1327 = vmatprep.subr.bf16.mxu0 0
          %1328 = vmatpush1.bf16.msra.mxu0 0
          %1329 = vmatprep.subr.bf16.mxu0 %v1310
          %1330 = vmatpush1.bf16.msra.mxu0 %v1307
          %1331 = vmatprep.subr.bf16.mxu0 0
          %1332 = vmatpush2.bf16.msra.mxu0 0
          %1333 = vmatprep.subr.bf16.mxu0 0
          %1334 = vmatpush2.bf16.msra.mxu0 0
          %1335 = vmatprep.subr.bf16.mxu0 0
          %1336 = vmatpush2.bf16.msra.mxu0 0
          %1337 = vmatprep.subr.bf16.mxu0 0
          %1338 = vmatpush2.bf16.msra.mxu0 0
          %1339 = vmatprep.subr.bf16.mxu0 0
          %1340 = vmatpush2.bf16.msra.mxu0 0
          %1341 = vmatprep.subr.bf16.mxu0 0
          %1342 = vmatpush2.bf16.msra.mxu0 0
          %1343 = vmatprep.subr.bf16.mxu0 0
          %1344 = vmatpush2.bf16.msra.mxu0 0
          %1345 = vmatprep.subr.bf16.mxu0 0
          %1346 = vmatpush2.bf16.msra.mxu0 0
          %1347 = vmatprep.mubr.bf16.mxu0 0
          %1348 = vmatmul.mubr.bf16.gmra.mxu0 %v1304
          %v1349 = vpop.f32.mrf.mxu0
          %v1350 = vadd.f32 0.0, %v1349
          %v1351 = vpop.f32.mrf.mxu0
          %v1352 = vadd.f32 0.0, %v1351
          %v1353 = vpop.f32.mrf.mxu0
          %v1354 = vpop.f32.mrf.mxu0
          %1355 = vdwg.mxu0
          %1356 = vmatprep.subr.bf16.mxu0 0
          %1357 = vmatpush1.bf16.msra.mxu0 0
          %1358 = vmatprep.subr.bf16.mxu0 0
          %1359 = vmatpush1.bf16.msra.mxu0 0
          %1360 = vmatprep.subr.bf16.mxu0 0
          %1361 = vmatpush1.bf16.msra.mxu0 0
          %1362 = vmatprep.subr.bf16.mxu0 0
          %1363 = vmatpush1.bf16.msra.mxu0 0
          %1364 = vmatprep.subr.bf16.mxu0 0
          %1365 = vmatpush1.bf16.msra.mxu0 0
          %1366 = vmatprep.subr.bf16.mxu0 0
          %1367 = vmatpush1.bf16.msra.mxu0 0
          %1368 = vmatprep.subr.bf16.mxu0 0
          %1369 = vmatpush1.bf16.msra.mxu0 0
          %1370 = vmatprep.subr.bf16.mxu0 0
          %1371 = vmatpush1.bf16.msra.mxu0 %v1313
          %1372 = vmatprep.subr.bf16.mxu0 0
          %1373 = vmatpush2.bf16.msra.mxu0 0
          %1374 = vmatprep.subr.bf16.mxu0 0
          %1375 = vmatpush2.bf16.msra.mxu0 0
          %1376 = vmatprep.subr.bf16.mxu0 0
          %1377 = vmatpush2.bf16.msra.mxu0 0
          %1378 = vmatprep.subr.bf16.mxu0 0
          %1379 = vmatpush2.bf16.msra.mxu0 0
          %1380 = vmatprep.subr.bf16.mxu0 0
          %1381 = vmatpush2.bf16.msra.mxu0 0
          %1382 = vmatprep.subr.bf16.mxu0 0
          %1383 = vmatpush2.bf16.msra.mxu0 0
          %1384 = vmatprep.subr.bf16.mxu0 0
          %1385 = vmatpush2.bf16.msra.mxu0 0
          %1386 = vmatprep.subr.bf16.mxu0 0
          %1387 = vmatpush2.bf16.msra.mxu0 0
          %1388 = vmatprep.mubr.bf16.mxu0 0
          %1389 = vmatmul.mubr.bf16.gmra.mxu0 %v1304
          %v1390 = vpop.f32.mrf.mxu0
          %v1391 = vadd.f32 0.0, %v1390
          %v1392 = vpop.f32.mrf.mxu0
          %v1393 = vpop.f32.mrf.mxu0
          %v1394 = vpop.f32.mrf.mxu0
          %1395 = vdwg.mxu0
          %v1396 = vadd.f32 %v1271, %v1350
          %v1397 = vadd.f32 %v1272, %v1352
          %v1398 = vadd.f32 %v1273, %v1391
          %v1399 = vld [vmem:[#allocation7] sm:$0xff]
          %v1400 = vld [vmem:[#allocation7 + $0x8] sm:$0xff]
          %v1401 = vld [vmem:[#allocation7 + $0x10] sm:$0xff]
          %v1402 = vld [vmem:[#allocation7 + $0x18] sm:$0xff]
          %v1403 = vld [vmem:[#allocation7 + $0x20] sm:$0xff]
          %v1404 = vld [vmem:[#allocation7 + $0x28] sm:$0xff]
          %v1405 = vld [vmem:[#allocation7 + $0x30] sm:$0xff]
          %v1406 = vld [vmem:[#allocation7 + $0x38] sm:$0xff]
          %v1407 = vld [vmem:[#allocation7 + $0x40] sm:$0xff]
          %v1408 = vld [vmem:[#allocation7 + $0x48] sm:$0xff]
          %v1409 = vld [vmem:[#allocation7 + $0x50] sm:$0xff]
          %v1410 = vld [vmem:[#allocation7 + $0x58] sm:$0xff]
          %v1411 = vld [vmem:[#allocation7 + $0x60] sm:$0xff]
          %v1412 = vld [vmem:[#allocation7 + $0x68] sm:$0xff]
          %v1413 = vld [vmem:[#allocation7 + $0x70] sm:$0xff]
          %v1414 = vld [vmem:[#allocation7 + $0x78] sm:$0xff]
          %v1415 = vld [vmem:[#allocation7 + $0x80] sm:$0xff]
          %v1416 = vld [vmem:[#allocation7 + $0x88] sm:$0xff]
          %v1417 = vld [vmem:[#allocation7 + $0x90] sm:$0xff]
          %v1418 = vld [vmem:[#allocation7 + $0x98] sm:$0xff]
          %v1419 = vld [vmem:[#allocation7 + $0xa0] sm:$0xff]
          %v1420 = vld [vmem:[#allocation7 + $0xa8] sm:$0xff]
          %v1421 = vld [vmem:[#allocation7 + $0xb0] sm:$0xff]
          %v1422 = vld [vmem:[#allocation7 + $0xb8] sm:$0xff]
          %v1423 = vld [vmem:[#allocation7 + $0xc0] sm:$0xff]
          %v1424 = vld [vmem:[#allocation7 + $0xc8] sm:$0xff]
          %v1425 = vld [vmem:[#allocation7 + $0xd0] sm:$0xff]
          %v1426 = vld [vmem:[#allocation7 + $0xd8] sm:$0xff]
          %v1427 = vld [vmem:[#allocation7 + $0xe0] sm:$0xff]
          %v1428 = vld [vmem:[#allocation7 + $0xe8] sm:$0xff]
          %v1429 = vld [vmem:[#allocation7 + $0xf0] sm:$0xff]
          %v1430 = vld [vmem:[#allocation7 + $0xf8] sm:$0xff]
          %v1431 = vld [vmem:[#allocation7 + $0x100] sm:$0xff]
          %v1432 = vld [vmem:[#allocation7 + $0x108] sm:$0xff]
          %v1433 = vld [vmem:[#allocation7 + $0x110] sm:$0xff]
          %v1434 = vld [vmem:[#allocation7 + $0x118] sm:$0xff]
          %v1435 = vld [vmem:[#allocation7 + $0x120] sm:$0xff]
          %v1436 = vld [vmem:[#allocation7 + $0x128] sm:$0xff]
          %v1437 = vld [vmem:[#allocation7 + $0x130] sm:$0xff]
          %v1438 = vld [vmem:[#allocation7 + $0x138] sm:$0xff]
          %v1439 = vld [vmem:[#allocation7 + $0x140] sm:$0xff]
          %v1440 = vld [vmem:[#allocation7 + $0x148] sm:$0xff]
          %v1441 = vld [vmem:[#allocation7 + $0x150] sm:$0xff]
          %v1442 = vld [vmem:[#allocation7 + $0x158] sm:$0xff]
          %v1443 = vld [vmem:[#allocation7 + $0x160] sm:$0xff]
          %v1444 = vld [vmem:[#allocation7 + $0x168] sm:$0xff]
          %v1445 = vld [vmem:[#allocation7 + $0x170] sm:$0xff]
          %v1446 = vld [vmem:[#allocation7 + $0x178] sm:$0xff]
          %v1447 = vld [vmem:[#allocation7 + $0x180] sm:$0xff]
          %v1448 = vld [vmem:[#allocation7 + $0x188] sm:$0xff]
          %v1449 = vld [vmem:[#allocation7 + $0x190] sm:$0xff]
          %v1450 = vld [vmem:[#allocation7 + $0x198] sm:$0xff]
          %v1451 = vld [vmem:[#allocation7 + $0x1a0] sm:$0xff]
          %v1452 = vld [vmem:[#allocation7 + $0x1a8] sm:$0xff]
          %v1453 = vld [vmem:[#allocation7 + $0x1b0] sm:$0xff]
          %v1454 = vld [vmem:[#allocation7 + $0x1b8] sm:$0xff]
          %v1455 = vld [vmem:[#allocation7 + $0x1c0] sm:$0xff]
          %v1456 = vld [vmem:[#allocation7 + $0x1c8] sm:$0xff]
          %v1457 = vld [vmem:[#allocation7 + $0x1d0] sm:$0xff]
          %v1458 = vld [vmem:[#allocation7 + $0x1d8] sm:$0xff]
          %v1459 = vld [vmem:[#allocation7 + $0x1e0] sm:$0xff]
          %v1460 = vld [vmem:[#allocation7 + $0x1e8] sm:$0xff]
          %v1461 = vld [vmem:[#allocation7 + $0x1f0] sm:$0xff]
          %v1462 = vld [vmem:[#allocation7 + $0x1f8] sm:$0xff]
          %v1463 = vld [vmem:[#allocation7 + $0x200] sm:$0xff]
          %v1464 = vld [vmem:[#allocation7 + $0x208] sm:$0xff]
          %v1465 = vld [vmem:[#allocation7 + $0x210] sm:$0xff]
          %v1466 = vld [vmem:[#allocation7 + $0x218] sm:$0xff]
          %v1467 = vld [vmem:[#allocation7 + $0x220] sm:$0xff]
          %v1468 = vld [vmem:[#allocation7 + $0x228] sm:$0xff]
          %v1469 = vld [vmem:[#allocation7 + $0x230] sm:$0xff]
          %v1470 = vld [vmem:[#allocation7 + $0x238] sm:$0xff]
          %v1471 = vld [vmem:[%s3] sm:$0xff]
          %1473 = vset.pattern.permute.xlu0 0
          %1474 = vperm.xlu0 %1473, %v1471
          %v1475 = vpop.permute.xlu0 %1474
          %vm1477 = vcmask 261120
          %v1479 = vsel %vm1477, %v1398, 0
          %1481 = vmatprep.subr.mxu0 %v1430
          %1482 = vmatpush1.msra.mxu0 %v1429
          %1483 = vmatprep.subr.mxu0 %v1428
          %1484 = vmatpush1.msra.mxu0 %v1427
          %1485 = vmatprep.subr.mxu0 %v1426
          %1486 = vmatpush1.msra.mxu0 %v1425
          %1487 = vmatprep.subr.mxu0 %v1424
          %1488 = vmatpush1.msra.mxu0 %v1423
          %1489 = vmatprep.subr.mxu0 %v1422
          %1490 = vmatpush1.msra.mxu0 %v1421
          %1491 = vmatprep.subr.mxu0 %v1420
          %1492 = vmatpush1.msra.mxu0 %v1419
          %1493 = vmatprep.subr.mxu0 %v1418
          %1494 = vmatpush1.msra.mxu0 %v1417
          %1495 = vmatprep.subr.mxu0 %v1416
          %1496 = vmatpush1.msra.mxu0 %v1415
          %1497 = vmatprep.subr.mxu0 %v1414
          %1498 = vmatpush1.msra.mxu0 %v1413
          %1499 = vmatprep.subr.mxu0 %v1412
          %1500 = vmatpush1.msra.mxu0 %v1411
          %1501 = vmatprep.subr.mxu0 %v1410
          %1502 = vmatpush1.msra.mxu0 %v1409
          %1503 = vmatprep.subr.mxu0 %v1408
          %1504 = vmatpush1.msra.mxu0 %v1407
          %1505 = vmatprep.subr.mxu0 %v1406
          %1506 = vmatpush1.msra.mxu0 %v1405
          %1507 = vmatprep.subr.mxu0 %v1404
          %1508 = vmatpush1.msra.mxu0 %v1403
          %1509 = vmatprep.subr.mxu0 %v1402
          %1510 = vmatpush1.msra.mxu0 %v1401
          %1511 = vmatprep.subr.mxu0 %v1400
          %1512 = vmatpush1.msra.mxu0 %v1399
          %1513 = vmatprep.subr.mxu0 %v1462
          %1514 = vmatpush2.msra.mxu0 %v1461
          %1515 = vmatprep.subr.mxu0 %v1460
          %1516 = vmatpush2.msra.mxu0 %v1459
          %1517 = vmatprep.subr.mxu0 %v1458
          %1518 = vmatpush2.msra.mxu0 %v1457
          %1519 = vmatprep.subr.mxu0 %v1456
          %1520 = vmatpush2.msra.mxu0 %v1455
          %1521 = vmatprep.subr.mxu0 %v1454
          %1522 = vmatpush2.msra.mxu0 %v1453
          %1523 = vmatprep.subr.mxu0 %v1452
          %1524 = vmatpush2.msra.mxu0 %v1451
          %1525 = vmatprep.subr.mxu0 %v1450
          %1526 = vmatpush2.msra.mxu0 %v1449
          %1527 = vmatprep.subr.mxu0 %v1448
          %1528 = vmatpush2.msra.mxu0 %v1447
          %1529 = vmatprep.subr.mxu0 %v1446
          %1530 = vmatpush2.msra.mxu0 %v1445
          %1531 = vmatprep.subr.mxu0 %v1444
          %1532 = vmatpush2.msra.mxu0 %v1443
          %1533 = vmatprep.subr.mxu0 %v1442
          %1534 = vmatpush2.msra.mxu0 %v1441
          %1535 = vmatprep.subr.mxu0 %v1440
          %1536 = vmatpush2.msra.mxu0 %v1439
          %1537 = vmatprep.subr.mxu0 %v1438
          %1538 = vmatpush2.msra.mxu0 %v1437
          %1539 = vmatprep.subr.mxu0 %v1436
          %1540 = vmatpush2.msra.mxu0 %v1435
          %1541 = vmatprep.subr.mxu0 %v1434
          %1542 = vmatpush2.msra.mxu0 %v1433
          %1543 = vmatprep.subr.mxu0 %v1432
          %1544 = vmatpush2.msra.mxu0 %v1431
          %1545 = vmatprep.mubr.f32.mxu0 %v1397
          %1546 = vmatmul.mubr.f32.gmra.mxu0 %v1396
          %v1547 = vpop.f32.mrf.mxu0
          %v1548 = vadd.f32 %v1475, %v1547
          %v1549 = vpop.f32.mrf.mxu0
          %v1550 = vadd.f32 %v1475, %v1549
          %1551 = vdwg.mxu0
          %1552 = vmatprep.subr.mxu0 0.0
          %1553 = vmatpush1.msra.mxu0 0.0
          %1554 = vmatprep.subr.mxu0 0.0
          %1555 = vmatpush1.msra.mxu0 0.0
          %1556 = vmatprep.subr.mxu0 0.0
          %1557 = vmatpush1.msra.mxu0 0.0
          %1558 = vmatprep.subr.mxu0 0.0
          %1559 = vmatpush1.msra.mxu0 0.0
          %1560 = vmatprep.subr.mxu0 0.0
          %1561 = vmatpush1.msra.mxu0 0.0
          %1562 = vmatprep.subr.mxu0 0.0
          %1563 = vmatpush1.msra.mxu0 0.0
          %1564 = vmatprep.subr.mxu0 0.0
          %1565 = vmatpush1.msra.mxu0 0.0
          %1566 = vmatprep.subr.mxu0 0.0
          %1567 = vmatpush1.msra.mxu0 0.0
          %1568 = vmatprep.subr.mxu0 0.0
          %1569 = vmatpush1.msra.mxu0 0.0
          %1570 = vmatprep.subr.mxu0 0.0
          %1571 = vmatpush1.msra.mxu0 0.0
          %1572 = vmatprep.subr.mxu0 0.0
          %1573 = vmatpush1.msra.mxu0 0.0
          %1574 = vmatprep.subr.mxu0 0.0
          %1575 = vmatpush1.msra.mxu0 0.0
          %1576 = vmatprep.subr.mxu0 %v1470
          %1577 = vmatpush1.msra.mxu0 %v1469
          %1578 = vmatprep.subr.mxu0 %v1468
          %1579 = vmatpush1.msra.mxu0 %v1467
          %1580 = vmatprep.subr.mxu0 %v1466
          %1581 = vmatpush1.msra.mxu0 %v1465
          %1582 = vmatprep.subr.mxu0 %v1464
          %1583 = vmatpush1.msra.mxu0 %v1463
          %1584 = vmatprep.subr.mxu0 0.0
          %1585 = vmatpush2.msra.mxu0 0.0
          %1586 = vmatprep.subr.mxu0 0.0
          %1587 = vmatpush2.msra.mxu0 0.0
          %1588 = vmatprep.subr.mxu0 0.0
          %1589 = vmatpush2.msra.mxu0 0.0
          %1590 = vmatprep.subr.mxu0 0.0
          %1591 = vmatpush2.msra.mxu0 0.0
          %1592 = vmatprep.subr.mxu0 0.0
          %1593 = vmatpush2.msra.mxu0 0.0
          %1594 = vmatprep.subr.mxu0 0.0
          %1595 = vmatpush2.msra.mxu0 0.0
          %1596 = vmatprep.subr.mxu0 0.0
          %1597 = vmatpush2.msra.mxu0 0.0
          %1598 = vmatprep.subr.mxu0 0.0
          %1599 = vmatpush2.msra.mxu0 0.0
          %1600 = vmatprep.subr.mxu0 0.0
          %1601 = vmatpush2.msra.mxu0 0.0
          %1602 = vmatprep.subr.mxu0 0.0
          %1603 = vmatpush2.msra.mxu0 0.0
          %1604 = vmatprep.subr.mxu0 0.0
          %1605 = vmatpush2.msra.mxu0 0.0
          %1606 = vmatprep.subr.mxu0 0.0
          %1607 = vmatpush2.msra.mxu0 0.0
          %1608 = vmatprep.subr.mxu0 0.0
          %1609 = vmatpush2.msra.mxu0 0.0
          %1610 = vmatprep.subr.mxu0 0.0
          %1611 = vmatpush2.msra.mxu0 0.0
          %1612 = vmatprep.subr.mxu0 0.0
          %1613 = vmatpush2.msra.mxu0 0.0
          %1614 = vmatprep.subr.mxu0 0.0
          %1615 = vmatpush2.msra.mxu0 0.0
          %1616 = vmatprep.mubr.f32.mxu0 0.0
          %1617 = vmatmul.mubr.f32.gmra.mxu0 %v1479
          %v1618 = vpop.f32.mrf.mxu0
          %v1619 = vadd.f32 %v1548, %v1618
          %v1620 = vpop.f32.mrf.mxu0
          %v1621 = vadd.f32 %v1550, %v1620
          %1622 = vdwg.mxu0
          %s1623 = smul.u32 %s26, 2
          %s1624 = smul.addr %s1623, 8
          %s1625 = scalar_lea.vmem [#allocation2], %s1624
          %1626 = vst [vmem:[%s1625] sm:$0xff] %v1619
          %1627 = vst [vmem:[%s1625 + $0x8] sm:$0xff] %v1621
          %v1628 = vld [vmem:[#allocation3] sm:$0xff]
          %v1629 = vadd.f32 %v1619, %v1621
          %1630 = vadd.xlane.f32.xlu0 %v1629
          %v1631 = vpop.xlane.xlu0 %1630
          %v1632 = vadd.f32 %v1628, %v1631
          %vm1633 = vcmask 7168
          %1634 = vst.msk [vmem:[#allocation3] sm:$0xff] %vm1633, %v1632
          %v1635 = vld [vmem:[#allocation4] sm:$0xff]
          %v1636 = vmul.f32 %v1619, %v1619
          %v1637 = vmul.f32 %v1621, %v1621
          %v1638 = vadd.f32 %v1636, %v1637
          %1639 = vadd.xlane.f32.xlu0 %v1638
          %v1640 = vpop.xlane.xlu0 %1639
          %v1641 = vadd.f32 %v1635, %v1640
          %1642 = vst.msk [vmem:[#allocation4] sm:$0xff] %vm1633, %v1641
        $region52: #{tpu_custom_call.1} parent=43 // pred_fallthru
          _
        %p1643 = scmp.eq.s32.totalorder %s25, 1
        // Predicated region
        $region57: #{tpu_custom_call.1} parent=43 // pred_check
          %p1644 = pneg %p1643
        $region58: #{tpu_custom_call.1} parent=43 // pred_check_branch
          %1646 = sbr.rel (%p1644) target = $region60
        $region59: #{tpu_custom_call.1} parent=43 // pred_region
          %p1647 = scmp.eq.s32.totalorder %s26, 0
          // Predicated region
          $region61: #{tpu_custom_call.1} parent=59 // pred_check
            %p1648 = pneg %p1647
          $region62: #{tpu_custom_call.1} parent=59 // pred_check_branch
            %1650 = sbr.rel (%p1648) target = $region64
          $region63: #{tpu_custom_call.1} parent=59 // pred_region
            %v1651 = vld [vmem:[#allocation3] sm:$0xff]
            %v1652 = vmul.f32 %v1651, 0.001953125
            %v1653 = vld [vmem:[#allocation4] sm:$0xff]
            %v1654 = vmul.f32 %v1653, 0.001953125
            %v1655 = vmul.f32 %v1652, %v1652
            %v1656 = vsub.f32 %v1654, %v1655
            %v1657 = vmax.f32 %v1656, 0.0
            %v1658 = vld [vmem:[%s4] sm:$0xff]
            %v1659 = vadd.f32 %v1657, 1e-05
            %v1660 = vrsqrt.pop %v1659
            %v1661 = vmul.f32 %v1658, %v1660
            %vm1662 = vcmask 7168
            %1663 = vst.msk [vmem:[#allocation5] sm:$0xff] %vm1662, %v1661
            %v1664 = vld [vmem:[%s5] sm:$0xff]
            %v1665 = vmul.f32 %v1652, %v1661
            %v1666 = vsub.f32 %v1664, %v1665
            %1667 = vst.msk [vmem:[#allocation6] sm:$0xff] %vm1662, %v1666
          $region64: #{tpu_custom_call.1} parent=59 // pred_fallthru
            _
          %s1668 = smul.u32 %s26, 2
          %s1669 = smul.addr %s1668, 8
          %s1670 = scalar_lea.vmem [#allocation2], %s1669
          %v1671 = vld [vmem:[%s1670] sm:$0xff]
          %v1672 = vld [vmem:[%s1670 + $0x8] sm:$0xff]
          %v1673 = vld [vmem:[#allocation5] sm:$0xff]
          %1675 = vset.pattern.permute.xlu0 0
          %1676 = vperm.xlu0 %1675, %v1673
          %v1677 = vpop.permute.xlu0 %1676
          %v1679 = vmul.f32 %v1671, %v1677
          %v1680 = vmul.f32 %v1672, %v1677
          %v1681 = vld [vmem:[#allocation6] sm:$0xff]
          %1683 = vset.pattern.permute.xlu0 0
          %1684 = vperm.xlu0 %1683, %v1681
          %v1685 = vpop.permute.xlu0 %1684
          %v1687 = vadd.f32 %v1679, %v1685
          %v1688 = vadd.f32 %v1680, %v1685
          %v1689 = vmax.f32 %v1687, 0.0
          %v1690 = vmax.f32 %v1688, 0.0
          %1691 = vst [vmem:[%s283] sm:$0xff] %v1689
          %1692 = vst [vmem:[%s283 + $0x8] sm:$0xff] %v1690
        $region60: #{tpu_custom_call.1} parent=43 // pred_fallthru
          _
        %s1693 = sand.u32 %s178, 1
        %s1694 = scalar_lea.sflag [#allocation9], %s1693
        %s1695 = sand.u32 %s178, 1
        %s1696 = smul.addr %s1695, 16
        %s1697 = scalar_lea.vmem [#allocation10], %s1696
        // Predicated region
        $region65: #{tpu_custom_call.1} parent=43 // pred_check
          %p1698 = pneg %p188
        $region66: #{tpu_custom_call.1} parent=43 // pred_check_branch
          %1700 = sbr.rel (%p1698) target = $region68
        $region67: #{tpu_custom_call.1} parent=43 // pred_region
          %s1701 = smul.u32 %s25, %s26
          %s1703 = ssub.s32 256, 256
          %1704 = vsyncadd %s1694, %s1703
          %s1705 = smul.addr %s1701, 2
          %s1706 = smul.addr %s1705, 128
          %s1707 = scalar_lea.hbm %s6, %s1706
          %s1709 = sshll.u32 %s1697, 4
          %s1710 = int_to_ptr.vmem [resolvable:$true] %s1709
          %1712 = dma.vmem_to_hbm [thread:$0]  %s1710, 256, %s1707, %s1694
        $region68: #{tpu_custom_call.1} parent=43 // pred_fallthru
          _
      $region44: #{tpu_custom_call.1} parent=5 // pred_fallthru
        _
      %p1713 = scmp.le.s32.totalorder 2, %s16
      // Predicated region
      $region69: #{tpu_custom_call.1} parent=5 // pred_check
        %p1714 = pneg %p1713
      $region70: #{tpu_custom_call.1} parent=5 // pred_check_branch
        %1716 = sbr.rel (%p1714) target = $region72
      $region71: #{tpu_custom_call.1} parent=5 // pred_region
        %s1717 = ssub.s32 %s16, 2
        // Predicated region
        $region73: #{tpu_custom_call.1} parent=71 // pred_check
          %p1718 = pneg %p194
        $region74: #{tpu_custom_call.1} parent=71 // pred_check_branch
          %1720 = sbr.rel (%p1718) target = $region76
        $region75: #{tpu_custom_call.1} parent=71 // pred_region
          %s1721 = sand.u32 %s179, 1
          %s1722 = scalar_lea.sflag [#allocation9], %s1721
          %s1723 = sand.u32 %s179, 1
          %s1724 = smul.addr %s1723, 16
          %s1725 = scalar_lea.vmem [#allocation10], %s1724
          %1726 = dma.done %s1722, 256
        $region76: #{tpu_custom_call.1} parent=71 // pred_fallthru
          _
      $region72: #{tpu_custom_call.1} parent=5 // pred_fallthru
        _
    $region6: #{tpu_custom_call.1} parent=1 // loop_footer
      %s20 = sadd.s32 1, %s16
    $region7: #{tpu_custom_call.1} parent=1 // loop_footer_branch
      %15 = sbr.rel target = $region3
    $region8: #{tpu_custom_call.1} parent=1 // loop_exit
      _
    %1727 = vsyncpa [#allocation8], 1
    %s1728 = scalar_lea.sflag [#allocation8], 1
    %1729 = vsyncpa %s1728, 1
    %1730 = vsyncpa [#allocation9], 1
    %s1731 = scalar_lea.sflag [#allocation9], 1
    %1732 = vsyncpa %s1731, 1

</llo_original>
